<compile_context>
chip_gen: v7x
topology: tpu7x:2x2x1
jax: 0.10.0
libtpu: 0.0.40
codegen_flags: <defaults>
</compile_context>

<pallas_src>
import jax
import jax.numpy as jnp
from jax.experimental import pallas as pl
from jax.experimental.pallas import tpu as pltpu


def _make_basic_block_kernel(nb, H, L):
    """Build the kernel closure for nb images of H rows, W*C = L lanes."""
    R = nb * H  # matmul M dimension

    def kernel(x_ref, w1_ref, b1_ref, w2_ref, b2_ref, out_ref, pad_ref):
        # x_ref   : (R, L)        bf16 lane-flattened activations (nb images)
        # w1_ref  : (3*L, L)      bf16 K-stacked banded conv1 weights (BN1 scale folded)
        # b1_ref  : (1, L)        f32 BN1 bias, lane-tiled
        # w2_ref  : (3*L, L)      bf16 K-stacked banded conv2 weights (BN2 scale folded)
        # b2_ref  : (1, L)        f32 BN2 bias, lane-tiled
        # out_ref : (R, L)        f32 output
        # pad_ref : (nb, H+2, L)  f32 VMEM per-image H-halo scratch

        # Zero only the two halo rows of every image.  Done every step (cheap,
        # 2*nb rows) so correctness does not depend on which core ran step 0.
        zrow = jnp.zeros((nb, 1, L), jnp.float32)
        pad_ref[:, 0:1, :] = zrow
        pad_ref[:, H + 1:H + 2, :] = zrow

        x = x_ref[...].astype(jnp.float32)              # (R, L)

        def conv3x3(act, w_ref):
            """3x3 'same' conv as ONE (R, 3L) x (3L, L) bf16 MXU matmul.

            kw taps + W-direction zero padding are baked into the banded
            weights; the H shift comes from the per-image halo scratch.
            """
            pad_ref[:, 1:H + 1, :] = act.reshape(nb, H, L)          # interior
            above = pad_ref[:, 0:H, :].reshape(R, L)                # kh = 0
            below = pad_ref[:, 2:H + 2, :].reshape(R, L)            # kh = 2
            cat = jnp.concatenate([above, act, below], axis=1)      # (R, 3L)
            return jnp.dot(cat.astype(jnp.bfloat16), w_ref[...],
                           preferred_element_type=jnp.float32)       # (R, L) f32

        # conv1 + BN1(bias only; scale folded into weights) + ReLU
        h1 = jnp.maximum(conv3x3(x, w1_ref) + b1_ref[...], 0.0)

        # conv2 + BN2(bias) + identity skip + ReLU
        h2 = conv3x3(h1, w2_ref) + b2_ref[...]
        out_ref[...] = jnp.maximum(h2 + x, 0.0).astype(out_ref.dtype)

    return kernel


def _lane_banded_conv_weights(wt, W):
    """Banded lane-space conv weights, stacked along K for the fused matmul.

    wt : (3, 3, Cin, Cout) HWIO conv weights (BN scale already folded in).
    Returns (3*W*Cin, W*Cout):
        rows [0,    W*Cin)  -> kh=0 band,
        rows [W*Cin,2*W*Cin)-> kh=1 band,
        rows [2*W*Cin, ...) -> kh=2 band,
    with B_kh[j*Cin+ci, w*Cout+co] = wt[kh, j-w+1, ci, co] when 0<=j-w+1<=2,
    else 0 (i.e. W-direction zero padding is in the band structure).
    """
    mats = []
    for kh in range(3):
        m = None
        for kw in range(3):
            sel = jnp.eye(W, W, k=1 - kw, dtype=jnp.float32)   # sel[j,w]=1 iff j==w+kw-1
            term = jnp.kron(sel, wt[kh, kw].astype(jnp.float32))
            m = term if m is None else m + term
        mats.append(m)
    return jnp.concatenate(mats, axis=0)


def basic_block_forward(x_nchw, w1, bn1, w2, bn2, eps=1e-5, images_per_block=8):
    """x_nchw: (N, C, H, W) like the PyTorch module.  Returns (N, C, H, W)."""
    N, Cin, H, W = x_nchw.shape
    Cmid = w1.shape[-1]
    Cout = w2.shape[-1]
    assert Cin == Cmid == Cout, \
        "identity skip (projection=None, expansion=1) requires equal channels"
    L = W * Cin

    # Images per grid step: largest divisor of N not exceeding images_per_block.
    nb = min(images_per_block, N)
    while N % nb != 0:
        nb -= 1
    R = nb * H

    # Inference-form BN: fold scale into conv weights, keep bias separate.
    g1, be1, m1, v1 = bn1
    g2, be2, m2, v2 = bn2
    s1 = g1 / jnp.sqrt(v1 + eps)
    s2 = g2 / jnp.sqrt(v2 + eps)
    w1s = w1.astype(jnp.float32) * s1[None, None, None, :]
    w2s = w2.astype(jnp.float32) * s2[None, None, None, :]
    b1 = (be1 - m1 * s1).astype(jnp.float32)
    b2 = (be2 - m2 * s2).astype(jnp.float32)

    # K-stacked banded lane-space weights (bf16) + lane-tiled biases (f32).
    w1b = _lane_banded_conv_weights(w1s, W).astype(jnp.bfloat16)   # (3L, L)
    w2b = _lane_banded_conv_weights(w2s, W).astype(jnp.bfloat16)   # (3L, L)
    b1t = jnp.tile(b1, W)[None, :]                                  # (1, L)
    b2t = jnp.tile(b2, W)[None, :]                                  # (1, L)

    # NCHW -> NHWC -> lane-flattened (N*H, W*C), bf16 for half the HBM traffic.
    # TODO(synk): in a real model, feed/keep this layout end-to-end instead of
    # transposing on both sides of every block.
    x = jnp.transpose(x_nchw, (0, 2, 3, 1)).reshape(N * H, L).astype(jnp.bfloat16)

    kernel = _make_basic_block_kernel(nb, H, L)

    out_flat = pl.pallas_call(
        kernel,
        out_shape=jax.ShapeDtypeStruct((N * H, L), jnp.float32),
        grid_spec=pltpu.PrefetchScalarGridSpec(
            num_scalar_prefetch=0,
            grid=(N // nb,),
            in_specs=[
                pl.BlockSpec((R, L), lambda n: (n, 0)),          # activations
                pl.BlockSpec((3 * L, L), lambda n: (0, 0)),      # conv1 weights
                pl.BlockSpec((1, L), lambda n: (0, 0)),          # bn1 bias
                pl.BlockSpec((3 * L, L), lambda n: (0, 0)),      # conv2 weights
                pl.BlockSpec((1, L), lambda n: (0, 0)),          # bn2 bias
            ],
            out_specs=pl.BlockSpec((R, L), lambda n: (n, 0)),
            scratch_shapes=[pltpu.VMEM((nb, H + 2, L), jnp.float32)],
        ),
        compiler_params=pltpu.CompilerParams(
            dimension_semantics=("parallel",)),   # batch axis -> megacore on v7x
    )(x, w1b, b1t, w2b, b2t)

    out = out_flat.reshape(N, H, W, Cout)
    return jnp.transpose(out, (0, 3, 1, 2))                      # back to NCHW


def reference_forward(x_nchw, w1, bn1, w2, bn2, eps=1e-5):
    """Pure-JAX f32 reference (NHWC convs) for correctness checking."""
    g1, be1, m1, v1 = bn1
    g2, be2, m2, v2 = bn2
    x = jnp.transpose(x_nchw, (0, 2, 3, 1)).astype(jnp.float32)
    dn = jax.lax.conv_dimension_numbers(x.shape, w1.shape, ("NHWC", "HWIO", "NHWC"))
    h = jax.lax.conv_general_dilated(x, w1, (1, 1), ((1, 1), (1, 1)),
                                     dimension_numbers=dn,
                                     precision=jax.lax.Precision.HIGHEST)
    h = (h - m1) / jnp.sqrt(v1 + eps) * g1 + be1
    h = jnp.maximum(h, 0.0)
    dn2 = jax.lax.conv_dimension_numbers(h.shape, w2.shape, ("NHWC", "HWIO", "NHWC"))
    h = jax.lax.conv_general_dilated(h, w2, (1, 1), ((1, 1), (1, 1)),
                                     dimension_numbers=dn2,
                                     precision=jax.lax.Precision.HIGHEST)
    h = (h - m2) / jnp.sqrt(v2 + eps) * g2 + be2
    out = jnp.maximum(h + x, 0.0)
    return jnp.transpose(out, (0, 3, 1, 2))


if __name__ == "__main__":
    # Shapes consistent with BasicBlock(in_channels=8, inner_channels=8):
    # W*C = 128 -> lane-dense rows; N=16 with nb=8 -> M=128 matmuls, grid=(2,).
    N, C, H, W = 16, 8, 16, 16
    Cin = Cmid = Cout = C

    key = jax.random.PRNGKey(0)
    kx, kw1, kw2 = jax.random.split(key, 3)

    x = jax.random.normal(kx, (N, Cin, H, W), dtype=jnp.float32)

    # Conv weights stored HWIO (3,3,Cin,Cout) for the NHWC formulation.
    w1 = (0.1 * jax.random.normal(kw1, (3, 3, Cin, Cmid))).astype(jnp.float32)
    w2 = (0.1 * jax.random.normal(kw2, (3, 3, Cmid, Cout))).astype(jnp.float32)

    # Deterministic, non-trivial BN parameters (gamma, beta, mean, var).
    bn1 = (1.0 + 0.10 * jnp.arange(Cmid, dtype=jnp.float32),
           0.05 * jnp.arange(Cmid, dtype=jnp.float32),
           0.01 * jnp.arange(Cmid, dtype=jnp.float32),
           1.0 + 0.02 * jnp.arange(Cmid, dtype=jnp.float32))
    bn2 = (1.0 - 0.05 * jnp.arange(Cout, dtype=jnp.float32),
           -0.03 * jnp.arange(Cout, dtype=jnp.float32),
           0.02 * jnp.arange(Cout, dtype=jnp.float32),
           1.0 + 0.01 * jnp.arange(Cout, dtype=jnp.float32))

    out = basic_block_forward(x, w1, bn1, w2, bn2)
    out = jax.block_until_ready(out)

    ref = reference_forward(x, w1, bn1, w2, bn2)
    assert out.shape == (N, Cout, H, W)
    max_err = jnp.max(jnp.abs(out - ref))
    # bf16 operands (input, weights, h1) vs. an f32 reference: tolerance is
    # correspondingly looser than the previous all-f32 version.
    assert jnp.allclose(out, ref, atol=1.5e-1, rtol=5e-2), \
        f"max abs err {max_err}"

    print("KERNEL_OK")
</pallas_src>

<mosaic_0001>
module attributes {stable_mosaic.version = 11 : i64} {
  func.func @kernel(%arg0: i32, %arg1: memref<128x128xbf16, #tpu.memory_space<vmem>>, %arg2: memref<384x128xbf16, #tpu.memory_space<vmem>>, %arg3: memref<1x128xf32, #tpu.memory_space<vmem>>, %arg4: memref<384x128xbf16, #tpu.memory_space<vmem>>, %arg5: memref<1x128xf32, #tpu.memory_space<vmem>>, %arg6: memref<128x128xf32, #tpu.memory_space<vmem>>, %arg7: memref<8x18x128xf32, #tpu.memory_space<vmem>>) attributes {dimension_semantics = [#tpu.dimension_semantics<parallel>], iteration_bounds = array<i64: 2>, scalar_prefetch = 0 : i64, scratch_operands = 1 : i64, tpu.core_type = #tpu.core_type<tc>, window_params = [{transform_indices = @transform_0, window_bounds = array<i64: 128, 128>}, {pipeline_mode = #tpu.pipeline_mode<synchronous>, transform_indices = @transform_1, window_bounds = array<i64: 384, 128>}, {pipeline_mode = #tpu.pipeline_mode<synchronous>, transform_indices = @transform_2, window_bounds = array<i64: 1, 128>}, {pipeline_mode = #tpu.pipeline_mode<synchronous>, transform_indices = @transform_3, window_bounds = array<i64: 384, 128>}, {pipeline_mode = #tpu.pipeline_mode<synchronous>, transform_indices = @transform_4, window_bounds = array<i64: 1, 128>}, {transform_indices = @transform_5, window_bounds = array<i64: 128, 128>}]} {
    %cst = arith.constant 0.000000e+00 : f32
    %0 = vector.broadcast %cst : f32 to vector<8x1x128xf32>
    %c0 = arith.constant 0 : index
    %c0_0 = arith.constant 0 : index
    %c0_1 = arith.constant 0 : index
    %1 = vector.load %arg7[%c0, %c0_0, %c0_1] : memref<8x18x128xf32, #tpu.memory_space<vmem>>, vector<8x1x128xf32>
    tpu.vector_store %arg7[%c0, %c0_0, %c0_1], %0 {strides = array<i32>} : memref<8x18x128xf32, #tpu.memory_space<vmem>>, vector<8x1x128xf32>,
    %c0_2 = arith.constant 0 : index
    %c17 = arith.constant 17 : index
    %c0_3 = arith.constant 0 : index
    %2 = vector.load %arg7[%c0_2, %c17, %c0_3] : memref<8x18x128xf32, #tpu.memory_space<vmem>>, vector<8x1x128xf32>
    tpu.vector_store %arg7[%c0_2, %c17, %c0_3], %0 {strides = array<i32>} : memref<8x18x128xf32, #tpu.memory_space<vmem>>, vector<8x1x128xf32>,
    %c0_4 = arith.constant 0 : index
    %c0_5 = arith.constant 0 : index
    %3 = vector.load %arg1[%c0_4, %c0_5] : memref<128x128xbf16, #tpu.memory_space<vmem>>, vector<128x128xbf16>
    %4 = arith.extf %3 : vector<128x128xbf16> to vector<128x128xf32>
    %5 = vector.shape_cast %4 : vector<128x128xf32> to vector<8x16x128xf32>
    %c0_6 = arith.constant 0 : index
    %c1 = arith.constant 1 : index
    %c0_7 = arith.constant 0 : index
    %6 = vector.load %arg7[%c0_6, %c1, %c0_7] : memref<8x18x128xf32, #tpu.memory_space<vmem>>, vector<8x16x128xf32>
    tpu.vector_store %arg7[%c0_6, %c1, %c0_7], %5 {strides = array<i32>} : memref<8x18x128xf32, #tpu.memory_space<vmem>>, vector<8x16x128xf32>,
    %c0_8 = arith.constant 0 : index
    %c0_9 = arith.constant 0 : index
    %c0_10 = arith.constant 0 : index
    %7 = vector.load %arg7[%c0_8, %c0_9, %c0_10] : memref<8x18x128xf32, #tpu.memory_space<vmem>>, vector<8x16x128xf32>
    %8 = vector.shape_cast %7 : vector<8x16x128xf32> to vector<128x128xf32>
    %c0_11 = arith.constant 0 : index
    %c2 = arith.constant 2 : index
    %c0_12 = arith.constant 0 : index
    %9 = vector.load %arg7[%c0_11, %c2, %c0_12] : memref<8x18x128xf32, #tpu.memory_space<vmem>>, vector<8x16x128xf32>
    %10 = vector.shape_cast %9 : vector<8x16x128xf32> to vector<128x128xf32>
    %11 = tpu.concatenate %8, %4, %10 in 1 : vector<128x128xf32>, vector<128x128xf32>, vector<128x128xf32> -> vector<128x384xf32>
    %12 = arith.truncf %11 : vector<128x384xf32> to vector<128x384xbf16>
    %c0_13 = arith.constant 0 : index
    %c0_14 = arith.constant 0 : index
    %13 = vector.load %arg2[%c0_13, %c0_14] : memref<384x128xbf16, #tpu.memory_space<vmem>>, vector<384x128xbf16>
    %cst_15 = arith.constant dense<0.000000e+00> : vector<128x128xf32>
    %14 = tpu.matmul %12, %13, %cst_15 {dimension_numbers = #tpu.dot_dimension_numbers<[1], [0], [0], [1], [0, 0, 1, 1], [], []>} : vector<128x384xbf16>, vector<384x128xbf16>, vector<128x128xf32> -> vector<128x128xf32>
    %c0_16 = arith.constant 0 : index
    %c0_17 = arith.constant 0 : index
    %15 = vector.load %arg3[%c0_16, %c0_17] : memref<1x128xf32, #tpu.memory_space<vmem>>, vector<1x128xf32>
    %16 = vector.broadcast %15 : vector<1x128xf32> to vector<128x128xf32>
    %17 = arith.addf %14, %16 : vector<128x128xf32>
    %cst_18 = arith.constant 0.000000e+00 : f32
    %18 = vector.broadcast %cst_18 : f32 to vector<128x128xf32>
    %19 = arith.maximumf %17, %18 : vector<128x128xf32>
    %20 = vector.shape_cast %19 : vector<128x128xf32> to vector<8x16x128xf32>
    %c0_19 = arith.constant 0 : index
    %c1_20 = arith.constant 1 : index
    %c0_21 = arith.constant 0 : index
    %21 = vector.load %arg7[%c0_19, %c1_20, %c0_21] : memref<8x18x128xf32, #tpu.memory_space<vmem>>, vector<8x16x128xf32>
    tpu.vector_store %arg7[%c0_19, %c1_20, %c0_21], %20 {strides = array<i32>} : memref<8x18x128xf32, #tpu.memory_space<vmem>>, vector<8x16x128xf32>,
    %c0_22 = arith.constant 0 : index
    %c0_23 = arith.constant 0 : index
    %c0_24 = arith.constant 0 : index
    %22 = vector.load %arg7[%c0_22, %c0_23, %c0_24] : memref<8x18x128xf32, #tpu.memory_space<vmem>>, vector<8x16x128xf32>
    %23 = vector.shape_cast %22 : vector<8x16x128xf32> to vector<128x128xf32>
    %c0_25 = arith.constant 0 : index
    %c2_26 = arith.constant 2 : index
    %c0_27 = arith.constant 0 : index
    %24 = vector.load %arg7[%c0_25, %c2_26, %c0_27] : memref<8x18x128xf32, #tpu.memory_space<vmem>>, vector<8x16x128xf32>
    %25 = vector.shape_cast %24 : vector<8x16x128xf32> to vector<128x128xf32>
    %26 = tpu.concatenate %23, %19, %25 in 1 : vector<128x128xf32>, vector<128x128xf32>, vector<128x128xf32> -> vector<128x384xf32>
    %27 = arith.truncf %26 : vector<128x384xf32> to vector<128x384xbf16>
    %c0_28 = arith.constant 0 : index
    %c0_29 = arith.constant 0 : index
    %28 = vector.load %arg4[%c0_28, %c0_29] : memref<384x128xbf16, #tpu.memory_space<vmem>>, vector<384x128xbf16>
    %cst_30 = arith.constant dense<0.000000e+00> : vector<128x128xf32>
    %29 = tpu.matmul %27, %28, %cst_30 {dimension_numbers = #tpu.dot_dimension_numbers<[1], [0], [0], [1], [0, 0, 1, 1], [], []>} : vector<128x384xbf16>, vector<384x128xbf16>, vector<128x128xf32> -> vector<128x128xf32>
    %c0_31 = arith.constant 0 : index
    %c0_32 = arith.constant 0 : index
    %30 = vector.load %arg5[%c0_31, %c0_32] : memref<1x128xf32, #tpu.memory_space<vmem>>, vector<1x128xf32>
    %31 = vector.broadcast %30 : vector<1x128xf32> to vector<128x128xf32>
    %32 = arith.addf %29, %31 : vector<128x128xf32>
    %33 = arith.addf %32, %4 : vector<128x128xf32>
    %cst_33 = arith.constant 0.000000e+00 : f32
    %34 = vector.broadcast %cst_33 : f32 to vector<128x128xf32>
    %35 = arith.maximumf %33, %34 : vector<128x128xf32>
    %c0_34 = arith.constant 0 : index
    %c0_35 = arith.constant 0 : index
    %36 = vector.load %arg6[%c0_34, %c0_35] : memref<128x128xf32, #tpu.memory_space<vmem>>, vector<128x128xf32>
    tpu.vector_store %arg6[%c0_34, %c0_35], %35 {strides = array<i32>} : memref<128x128xf32, #tpu.memory_space<vmem>>, vector<128x128xf32>,
    return
  }
  func.func @transform_0(%arg0: i32) -> (i32, i32) {
    %c0_i32 = arith.constant 0 : i32
    %c0_i32_0 = arith.constant 0 : i32
    return %arg0, %c0_i32 : i32, i32
  }
  func.func @transform_1(%arg0: i32) -> (i32, i32) {
    %c0_i32 = arith.constant 0 : i32
    %c0_i32_0 = arith.constant 0 : i32
    %c0_i32_1 = arith.constant 0 : i32
    return %c0_i32, %c0_i32_0 : i32, i32
  }
  func.func @transform_2(%arg0: i32) -> (i32, i32) {
    %c0_i32 = arith.constant 0 : i32
    %c0_i32_0 = arith.constant 0 : i32
    %c0_i32_1 = arith.constant 0 : i32
    return %c0_i32, %c0_i32_0 : i32, i32
  }
  func.func @transform_3(%arg0: i32) -> (i32, i32) {
    %c0_i32 = arith.constant 0 : i32
    %c0_i32_0 = arith.constant 0 : i32
    %c0_i32_1 = arith.constant 0 : i32
    return %c0_i32, %c0_i32_0 : i32, i32
  }
  func.func @transform_4(%arg0: i32) -> (i32, i32) {
    %c0_i32 = arith.constant 0 : i32
    %c0_i32_0 = arith.constant 0 : i32
    %c0_i32_1 = arith.constant 0 : i32
    return %c0_i32, %c0_i32_0 : i32, i32
  }
  func.func @transform_5(%arg0: i32) -> (i32, i32) {
    %c0_i32 = arith.constant 0 : i32
    %c0_i32_0 = arith.constant 0 : i32
    return %arg0, %c0_i32 : i32, i32
  }
}

</mosaic_0001>

<llo_original>
// kernel: tpu_custom_call.1
$region0: #{tpu_custom_call.1}
  #allocation0 [shape = 'u32[]', space=smem, size = 0x4, offset = 0x4, fixed_abs, tag = 'smem constant byte address 0x4 - core index']
  #allocation1 [shape = 'u32[144,128]{1,0:T(1,128)}', space=vmem, size = 0x12000, scoped, tag = 'internal scratch']
  #allocation2 [shape = 'f32[8,18,128]{2,1,0:T(8,128)}', space=vmem, size = 0x18000, scoped, tag = 'scratch operand']
  %s0 = inlined_call_operand.hbm [shape: bf16[256,128], index: 0, kind: input, shape index: {}]
  %s1 = inlined_call_operand.hbm [shape: bf16[384,128], index: 1, kind: input, shape index: {}]
  %s2 = inlined_call_operand.vmem [shape: f32[1,128], index: 2, kind: input, shape index: {}]
  %s3 = inlined_call_operand.hbm [shape: bf16[384,128], index: 3, kind: input, shape index: {}]
  %s4 = inlined_call_operand.vmem [shape: f32[1,128], index: 4, kind: input, shape index: {}]
  %s5 = inlined_call_operand.hbm [shape: f32[256,128], index: 5, kind: output, shape index: {}]
  %s6 = sld [smem:[#allocation0]]
  $region65: #{tpu_custom_call.1} parent=0
    _
  %s8 = ssub.s32 1, %s6
  %s9 = scalar_select 0, %s8, %s6
  $region1: #{tpu_custom_call.1} parent=0
    #allocation3 [shape = 'u8[65536]{0}', space=vmem, size = 0x10000, scoped, tag = 'input window, operand 0']
    #allocation4 [shape = 's32[2]{0}', space=sflag, size = 0x8, scoped, tag = 'scoped memory for tpu_custom_call.1']
    #allocation5 [shape = 's32[2]{0}', space=sflag, size = 0x8, scoped, tag = 'scoped memory for tpu_custom_call.1']
    #allocation6 [shape = 'u8[98304]{0}', space=vmem, size = 0x18000, scoped, tag = 'input window, operand 1, single buffered']
    #allocation7 [shape = 's32[1]{0}', space=sflag, size = 0x4, scoped, tag = 'scoped memory for tpu_custom_call.1']
    #allocation8 [shape = 'u8[98304]{0}', space=vmem, size = 0x18000, scoped, tag = 'input window, operand 3, single buffered']
    #allocation9 [shape = 'u8[131072]{0}', space=vmem, size = 0x20000, scoped, tag = 'output window, operand 0']
    %10 = vsyncpa [#allocation4], 0
    %s11 = scalar_lea.sflag [#allocation4], 1
    %12 = vsyncpa %s11, 0
    %13 = vsyncpa [#allocation7], 0
    %14 = vsyncpa [#allocation5], 0
    %s15 = scalar_lea.sflag [#allocation5], 1
    %16 = vsyncpa %s15, 0
    loop: start=0, step=1, limit=4
    $region2: #{tpu_custom_call.1} parent=1 // loop_pre_header
      _
    $region3: #{tpu_custom_call.1} parent=1 // loop_header
      %s18 = sphi 0, %s22
      %p19 = scmp.ge.s32.totalorder %s18, 4
      %s28 = sphi 0, %s30
      %s31 = sphi 0, %s28
      %s32 = sphi 0, %s31
      %s48 = sphi 0, %s32
      %s52 = sphi 0, %s52
      %s54 = sphi 0, %s52
      %s55 = sphi 0, %s54
      %s69 = sphi 0, %s55
      %s73 = sphi 0, %s73
      %s75 = sphi 0, %s73
      %s76 = sphi 0, %s75
      %s90 = sphi 0, %s76
      %s94 = sphi 0, %s94
      %s96 = sphi 0, %s94
      %s97 = sphi 0, %s96
      %s111 = sphi 0, %s97
      %s115 = sphi 0, %s115
      %s117 = sphi 0, %s115
      %s118 = sphi 0, %s117
      %s132 = sphi 0, %s118
      %s138 = sphi 0, %s140
      %s141 = sphi 0, %s138
      %s142 = sphi 0, %s141
      %s158 = sphi 0, %s142
    $region4: #{tpu_custom_call.1} parent=1 // loop_header_branch
      %21 = sbr.rel (%p19) target = $region8
    $region5: #{tpu_custom_call.1} parent=1 // loop_body
      %s23 = ssub.s32 %s18, 1
      %s24 = ssub.s32 %s18, 2
      %s25 = sadd.s32 %s18, 1
      %s26 = ssub.s32 %s18, %s25
      %p27 = scmp.eq.s32.totalorder %s26, 0
      %s29 = sadd.s32 %s28, 1
      %s30 = scalar_select %p27, %s28, %s29
      %p33 = pneg %p27
      %p34 = scmp.eq.s32.totalorder %s18, 1
      %p35 = por %p33, %p34
      %p36 = scmp.ne.s32.totalorder %s28, %s31
      %p37 = scmp.eq.s32.totalorder %s18, 0
      %p38 = por %p36, %p37
      %p39 = scmp.ne.s32.totalorder %s28, %s31
      %p40 = scmp.eq.s32.totalorder %s23, 1
      %p41 = por %p39, %p40
      %p42 = scmp.ne.s32.totalorder %s31, %s32
      %p43 = scmp.eq.s32.totalorder %s23, 0
      %p44 = por %p42, %p43
      %p45 = scmp.ne.s32.totalorder %s31, %s32
      %p46 = scmp.eq.s32.totalorder %s24, 1
      %p47 = por %p45, %p46
      %p49 = scmp.ne.s32.totalorder %s32, %s48
      %p50 = scmp.eq.s32.totalorder %s24, 0
      %p51 = por %p49, %p50
      %s53 = sadd.s32 %s52, 1
      %p56 = scmp.eq.s32.totalorder %s18, 1
      %p57 = scmp.ne.s32.totalorder %s52, %s54
      %p58 = scmp.eq.s32.totalorder %s18, 0
      %p59 = por %p57, %p58
      %p60 = scmp.ne.s32.totalorder %s52, %s54
      %p61 = scmp.eq.s32.totalorder %s23, 1
      %p62 = por %p60, %p61
      %p63 = scmp.ne.s32.totalorder %s54, %s55
      %p64 = scmp.eq.s32.totalorder %s23, 0
      %p65 = por %p63, %p64
      %p66 = scmp.ne.s32.totalorder %s54, %s55
      %p67 = scmp.eq.s32.totalorder %s24, 1
      %p68 = por %p66, %p67
      %p70 = scmp.ne.s32.totalorder %s55, %s69
      %p71 = scmp.eq.s32.totalorder %s24, 0
      %p72 = por %p70, %p71
      %s74 = sadd.s32 %s73, 1
      %p77 = scmp.eq.s32.totalorder %s18, 1
      %p78 = scmp.ne.s32.totalorder %s73, %s75
      %p79 = scmp.eq.s32.totalorder %s18, 0
      %p80 = por %p78, %p79
      %p81 = scmp.ne.s32.totalorder %s73, %s75
      %p82 = scmp.eq.s32.totalorder %s23, 1
      %p83 = por %p81, %p82
      %p84 = scmp.ne.s32.totalorder %s75, %s76
      %p85 = scmp.eq.s32.totalorder %s23, 0
      %p86 = por %p84, %p85
      %p87 = scmp.ne.s32.totalorder %s75, %s76
      %p88 = scmp.eq.s32.totalorder %s24, 1
      %p89 = por %p87, %p88
      %p91 = scmp.ne.s32.totalorder %s76, %s90
      %p92 = scmp.eq.s32.totalorder %s24, 0
      %p93 = por %p91, %p92
      %s95 = sadd.s32 %s94, 1
      %p98 = scmp.eq.s32.totalorder %s18, 1
      %p99 = scmp.ne.s32.totalorder %s94, %s96
      %p100 = scmp.eq.s32.totalorder %s18, 0
      %p101 = por %p99, %p100
      %p102 = scmp.ne.s32.totalorder %s94, %s96
      %p103 = scmp.eq.s32.totalorder %s23, 1
      %p104 = por %p102, %p103
      %p105 = scmp.ne.s32.totalorder %s96, %s97
      %p106 = scmp.eq.s32.totalorder %s23, 0
      %p107 = por %p105, %p106
      %p108 = scmp.ne.s32.totalorder %s96, %s97
      %p109 = scmp.eq.s32.totalorder %s24, 1
      %p110 = por %p108, %p109
      %p112 = scmp.ne.s32.totalorder %s97, %s111
      %p113 = scmp.eq.s32.totalorder %s24, 0
      %p114 = por %p112, %p113
      %s116 = sadd.s32 %s115, 1
      %p119 = scmp.eq.s32.totalorder %s18, 1
      %p120 = scmp.ne.s32.totalorder %s115, %s117
      %p121 = scmp.eq.s32.totalorder %s18, 0
      %p122 = por %p120, %p121
      %p123 = scmp.ne.s32.totalorder %s115, %s117
      %p124 = scmp.eq.s32.totalorder %s23, 1
      %p125 = por %p123, %p124
      %p126 = scmp.ne.s32.totalorder %s117, %s118
      %p127 = scmp.eq.s32.totalorder %s23, 0
      %p128 = por %p126, %p127
      %p129 = scmp.ne.s32.totalorder %s117, %s118
      %p130 = scmp.eq.s32.totalorder %s24, 1
      %p131 = por %p129, %p130
      %p133 = scmp.ne.s32.totalorder %s118, %s132
      %p134 = scmp.eq.s32.totalorder %s24, 0
      %p135 = por %p133, %p134
      %s136 = ssub.s32 %s18, %s25
      %p137 = scmp.eq.s32.totalorder %s136, 0
      %s139 = sadd.s32 %s138, 1
      %s140 = scalar_select %p137, %s138, %s139
      %p143 = pneg %p137
      %p144 = scmp.eq.s32.totalorder %s18, 1
      %p145 = por %p143, %p144
      %p146 = scmp.ne.s32.totalorder %s138, %s141
      %p147 = scmp.eq.s32.totalorder %s18, 0
      %p148 = por %p146, %p147
      %p149 = scmp.ne.s32.totalorder %s138, %s141
      %p150 = scmp.eq.s32.totalorder %s23, 1
      %p151 = por %p149, %p150
      %p152 = scmp.ne.s32.totalorder %s141, %s142
      %p153 = scmp.eq.s32.totalorder %s23, 0
      %p154 = por %p152, %p153
      %p155 = scmp.ne.s32.totalorder %s141, %s142
      %p156 = scmp.eq.s32.totalorder %s24, 1
      %p157 = por %p155, %p156
      %p159 = scmp.ne.s32.totalorder %s142, %s158
      %p160 = scmp.eq.s32.totalorder %s24, 0
      %p161 = por %p159, %p160
      %p162 = scmp.le.s32.totalorder 1, %s18
      %p163 = scmp.lt.s32.totalorder %s18, 3
      %p164 = pnand %p162, %p163
      %p165 = pneg %p164
      // Predicated region
      $region9: #{tpu_custom_call.1} parent=5 // pred_check
        _
      $region10: #{tpu_custom_call.1} parent=5 // pred_check_branch
        %167 = sbr.rel (%p164) target = $region12
      $region11: #{tpu_custom_call.1} parent=5 // pred_region
        %s168 = ssub.s32 %s18, 1
        // Predicated region
        $region13: #{tpu_custom_call.1} parent=11 // pred_check
          %p169 = pneg %p65
        $region14: #{tpu_custom_call.1} parent=11 // pred_check_branch
          %171 = sbr.rel (%p169) target = $region16
        $region15: #{tpu_custom_call.1} parent=11 // pred_region
          %s173 = ssub.s32 3072, 3072
          %174 = vsyncadd [#allocation7], %s173
          %s175 = sshll.u32 [#allocation6], 4
          %s176 = int_to_ptr.vmem [resolvable:$true] %s175
          %181 = dma.hbm_to_vmem [thread:$0]  %s1, 3072, %s176, [#allocation7], 64, 64, 4
        $region16: #{tpu_custom_call.1} parent=11 // pred_fallthru
          _
        // Predicated region
        $region17: #{tpu_custom_call.1} parent=11 // pred_check
          %p182 = pneg %p86
        $region18: #{tpu_custom_call.1} parent=11 // pred_check_branch
          %184 = sbr.rel (%p182) target = $region20
        $region19: #{tpu_custom_call.1} parent=11 // pred_region
          _
        $region20: #{tpu_custom_call.1} parent=11 // pred_fallthru
          _
        // Predicated region
        $region21: #{tpu_custom_call.1} parent=11 // pred_check
          %p185 = pneg %p107
        $region22: #{tpu_custom_call.1} parent=11 // pred_check_branch
          %187 = sbr.rel (%p185) target = $region24
        $region23: #{tpu_custom_call.1} parent=11 // pred_region
          %s189 = ssub.s32 3072, 3072
          %190 = vsyncadd [#allocation7], %s189
          %s191 = sshll.u32 [#allocation8], 4
          %s192 = int_to_ptr.vmem [resolvable:$true] %s191
          %197 = dma.hbm_to_vmem [thread:$0]  %s3, 3072, %s192, [#allocation7], 64, 64, 4
        $region24: #{tpu_custom_call.1} parent=11 // pred_fallthru
          _
        // Predicated region
        $region25: #{tpu_custom_call.1} parent=11 // pred_check
          %p198 = pneg %p128
        $region26: #{tpu_custom_call.1} parent=11 // pred_check_branch
          %200 = sbr.rel (%p198) target = $region28
        $region27: #{tpu_custom_call.1} parent=11 // pred_region
          _
        $region28: #{tpu_custom_call.1} parent=11 // pred_fallthru
          _
      $region12: #{tpu_custom_call.1} parent=5 // pred_fallthru
        _
      %p201 = scmp.lt.s32.totalorder %s18, 2
      // Predicated region
      $region29: #{tpu_custom_call.1} parent=5 // pred_check
        %p202 = pneg %p201
      $region30: #{tpu_custom_call.1} parent=5 // pred_check_branch
        %204 = sbr.rel (%p202) target = $region32
      $region31: #{tpu_custom_call.1} parent=5 // pred_region
        // Predicated region
        $region33: #{tpu_custom_call.1} parent=31 // pred_check
          %p205 = pneg %p38
        $region34: #{tpu_custom_call.1} parent=31 // pred_check_branch
          %207 = sbr.rel (%p205) target = $region36
        $region35: #{tpu_custom_call.1} parent=31 // pred_region
          %s208 = sand.u32 %s28, 1
          %s209 = scalar_lea.sflag [#allocation4], %s208
          %s210 = sand.u32 %s28, 1
          %s211 = smul.addr %s210, 64
          %s212 = scalar_lea.vmem [#allocation3], %s211
          %s213 = smul.u32 16, %s18
          %s215 = ssub.s32 1024, 1024
          %216 = vsyncadd %s209, %s215
          %s217 = smul.addr %s213, 64
          %s218 = scalar_lea.hbm %s0, %s217
          %s219 = sshll.u32 %s212, 4
          %s220 = int_to_ptr.vmem [resolvable:$true] %s219
          %225 = dma.hbm_to_vmem [thread:$0]  %s218, 1024, %s220, %s209, 64, 64, 4
        $region36: #{tpu_custom_call.1} parent=31 // pred_fallthru
          _
      $region32: #{tpu_custom_call.1} parent=5 // pred_fallthru
        _
      %p226 = scmp.le.s32.totalorder 1, %s18
      %p227 = scmp.lt.s32.totalorder %s18, 3
      %p228 = pnand %p226, %p227
      %p229 = pneg %p228
      // Predicated region
      $region37: #{tpu_custom_call.1} parent=5 // pred_check
        _
      $region38: #{tpu_custom_call.1} parent=5 // pred_check_branch
        %231 = sbr.rel (%p228) target = $region40
      $region39: #{tpu_custom_call.1} parent=5 // pred_region
        %s232 = ssub.s32 %s18, 1
        %s233 = sand.u32 %s31, 1
        %s234 = scalar_lea.sflag [#allocation4], %s233
        %s235 = sand.u32 %s31, 1
        %s236 = smul.addr %s235, 64
        %s237 = scalar_lea.vmem [#allocation3], %s236
        // Predicated region
        $region41: #{tpu_custom_call.1} parent=39 // pred_check
          %p238 = pneg %p44
        $region42: #{tpu_custom_call.1} parent=39 // pred_check_branch
          %240 = sbr.rel (%p238) target = $region44
        $region43: #{tpu_custom_call.1} parent=39 // pred_region
          %241 = dma.done %s234, 1024
        $region44: #{tpu_custom_call.1} parent=39 // pred_fallthru
          _
        // Predicated region
        $region45: #{tpu_custom_call.1} parent=39 // pred_check
          %p242 = pneg %p65
        $region46: #{tpu_custom_call.1} parent=39 // pred_check_branch
          %244 = sbr.rel (%p242) target = $region48
        $region47: #{tpu_custom_call.1} parent=39 // pred_region
          %245 = dma.done [#allocation7], 3072
        $region48: #{tpu_custom_call.1} parent=39 // pred_fallthru
          _
        // Predicated region
        $region49: #{tpu_custom_call.1} parent=39 // pred_check
          %p246 = pneg %p107
        $region50: #{tpu_custom_call.1} parent=39 // pred_check_branch
          %248 = sbr.rel (%p246) target = $region52
        $region51: #{tpu_custom_call.1} parent=39 // pred_region
          %249 = dma.done [#allocation7], 3072
        $region52: #{tpu_custom_call.1} parent=39 // pred_fallthru
          _
        %s250 = sand.u32 %s31, 1
        %s251 = scalar_lea.sflag [#allocation4], %s250
        %s252 = sand.u32 %s31, 1
        %s253 = smul.addr %s252, 64
        %s254 = scalar_lea.vmem [#allocation3], %s253
        %p255 = pneg %p44
        %p256 = pneg %p41
        %p257 = pneg %p65
        %p258 = pneg %p62
        %p259 = pneg %p86
        %p260 = pneg %p83
        %p261 = pneg %p107
        %p262 = pneg %p104
        %p263 = pneg %p128
        %p264 = pneg %p125
        %p265 = pneg %p154
        %p266 = pneg %p151
        %s267 = sand.u32 %s141, 1
        %s268 = scalar_lea.sflag [#allocation5], %s267
        %s269 = sand.u32 %s141, 1
        %s270 = smul.addr %s269, 128
        %s271 = scalar_lea.vmem [#allocation9], %s270
        %s272 = smul.u32 16, %s23
        %s273 = smul.u32 16, %s23
        %275 = vst [vmem:[#allocation2] sm:$0x1] 0.0
        %276 = vst [vmem:[#allocation2 + $0x18] sm:$0x1] 0.0
        %277 = vst [vmem:[#allocation2 + $0x30] sm:$0x1] 0.0
        %278 = vst [vmem:[#allocation2 + $0x48] sm:$0x1] 0.0
        %279 = vst [vmem:[#allocation2 + $0x60] sm:$0x1] 0.0
        %280 = vst [vmem:[#allocation2 + $0x78] sm:$0x1] 0.0
        %281 = vst [vmem:[#allocation2 + $0x90] sm:$0x1] 0.0
        %282 = vst [vmem:[#allocation2 + $0xa8] sm:$0x1] 0.0
        %283 = vst [vmem:[#allocation2 + $0x11] sm:$0x1] 0.0
        %284 = vst [vmem:[#allocation2 + $0x29] sm:$0x1] 0.0
        %285 = vst [vmem:[#allocation2 + $0x41] sm:$0x1] 0.0
        %286 = vst [vmem:[#allocation2 + $0x59] sm:$0x1] 0.0
        %287 = vst [vmem:[#allocation2 + $0x71] sm:$0x1] 0.0
        %288 = vst [vmem:[#allocation2 + $0x89] sm:$0x1] 0.0
        %289 = vst [vmem:[#allocation2 + $0xa1] sm:$0x1] 0.0
        %290 = vst [vmem:[#allocation2 + $0xb9] sm:$0x1] 0.0
        %v291 = vld [vmem:[%s237] sm:$0xf]
        %v292 = vld [vmem:[%s237 + $0x4] sm:$0xf]
        %v293 = vld [vmem:[%s237 + $0x8] sm:$0xf]
        %v294 = vld [vmem:[%s237 + $0xc] sm:$0xf]
        %v295 = vld [vmem:[%s237 + $0x10] sm:$0xf]
        %v296 = vld [vmem:[%s237 + $0x14] sm:$0xf]
        %v297 = vld [vmem:[%s237 + $0x18] sm:$0xf]
        %v298 = vld [vmem:[%s237 + $0x1c] sm:$0xf]
        %v299 = vld [vmem:[%s237 + $0x20] sm:$0xf]
        %v300 = vld [vmem:[%s237 + $0x24] sm:$0xf]
        %v301 = vld [vmem:[%s237 + $0x28] sm:$0xf]
        %v302 = vld [vmem:[%s237 + $0x2c] sm:$0xf]
        %v303 = vld [vmem:[%s237 + $0x30] sm:$0xf]
        %v304 = vld [vmem:[%s237 + $0x34] sm:$0xf]
        %v305 = vld [vmem:[%s237 + $0x38] sm:$0xf]
        %v306 = vld [vmem:[%s237 + $0x3c] sm:$0xf]
        %v307 = vunpack.c.l.bf16 %v291
        %v308 = vunpack.c.l.bf16 %v292
        %v309 = vunpack.c.l.bf16 %v293
        %v310 = vunpack.c.l.bf16 %v294
        %v311 = vunpack.c.l.bf16 %v295
        %v312 = vunpack.c.l.bf16 %v296
        %v313 = vunpack.c.l.bf16 %v297
        %v314 = vunpack.c.l.bf16 %v298
        %v315 = vunpack.c.l.bf16 %v299
        %v316 = vunpack.c.l.bf16 %v300
        %v317 = vunpack.c.l.bf16 %v301
        %v318 = vunpack.c.l.bf16 %v302
        %v319 = vunpack.c.l.bf16 %v303
        %v320 = vunpack.c.l.bf16 %v304
        %v321 = vunpack.c.l.bf16 %v305
        %v322 = vunpack.c.l.bf16 %v306
        %323 = vst [vmem:[#allocation2 + $0x1] sm:$0xff] %v307
        %324 = vst [vmem:[#allocation2 + $0x9] sm:$0xff] %v308
        %325 = vst [vmem:[#allocation2 + $0x19] sm:$0xff] %v309
        %326 = vst [vmem:[#allocation2 + $0x21] sm:$0xff] %v310
        %327 = vst [vmem:[#allocation2 + $0x31] sm:$0xff] %v311
        %328 = vst [vmem:[#allocation2 + $0x39] sm:$0xff] %v312
        %329 = vst [vmem:[#allocation2 + $0x49] sm:$0xff] %v313
        %330 = vst [vmem:[#allocation2 + $0x51] sm:$0xff] %v314
        %331 = vst [vmem:[#allocation2 + $0x61] sm:$0xff] %v315
        %332 = vst [vmem:[#allocation2 + $0x69] sm:$0xff] %v316
        %333 = vst [vmem:[#allocation2 + $0x79] sm:$0xff] %v317
        %334 = vst [vmem:[#allocation2 + $0x81] sm:$0xff] %v318
        %335 = vst [vmem:[#allocation2 + $0x91] sm:$0xff] %v319
        %336 = vst [vmem:[#allocation2 + $0x99] sm:$0xff] %v320
        %337 = vst [vmem:[#allocation2 + $0xa9] sm:$0xff] %v321
        %338 = vst [vmem:[#allocation2 + $0xb1] sm:$0xff] %v322
        %v339 = vld [vmem:[#allocation2] sm:$0xff]
        %v340 = vld [vmem:[#allocation2 + $0x8] sm:$0xff]
        %v341 = vld [vmem:[#allocation2 + $0x18] sm:$0xff]
        %v342 = vld [vmem:[#allocation2 + $0x20] sm:$0xff]
        %v343 = vld [vmem:[#allocation2 + $0x30] sm:$0xff]
        %v344 = vld [vmem:[#allocation2 + $0x38] sm:$0xff]
        %v345 = vld [vmem:[#allocation2 + $0x48] sm:$0xff]
        %v346 = vld [vmem:[#allocation2 + $0x50] sm:$0xff]
        %v347 = vld [vmem:[#allocation2 + $0x60] sm:$0xff]
        %v348 = vld [vmem:[#allocation2 + $0x68] sm:$0xff]
        %v349 = vld [vmem:[#allocation2 + $0x78] sm:$0xff]
        %v350 = vld [vmem:[#allocation2 + $0x80] sm:$0xff]
        %v351 = vld [vmem:[#allocation2 + $0x90] sm:$0xff]
        %v352 = vld [vmem:[#allocation2 + $0x98] sm:$0xff]
        %v353 = vld [vmem:[#allocation2 + $0xa8] sm:$0xff]
        %v354 = vld [vmem:[#allocation2 + $0xb0] sm:$0xff]
        %v355 = vld [vmem:[#allocation2 + $0x2] sm:$0xff]
        %v356 = vld [vmem:[#allocation2 + $0xa] sm:$0xff]
        %v357 = vld [vmem:[#allocation2 + $0x1a] sm:$0xff]
        %v358 = vld [vmem:[#allocation2 + $0x22] sm:$0xff]
        %v359 = vld [vmem:[#allocation2 + $0x32] sm:$0xff]
        %v360 = vld [vmem:[#allocation2 + $0x3a] sm:$0xff]
        %v361 = vld [vmem:[#allocation2 + $0x4a] sm:$0xff]
        %v362 = vld [vmem:[#allocation2 + $0x52] sm:$0xff]
        %v363 = vld [vmem:[#allocation2 + $0x62] sm:$0xff]
        %v364 = vld [vmem:[#allocation2 + $0x6a] sm:$0xff]
        %v365 = vld [vmem:[#allocation2 + $0x7a] sm:$0xff]
        %v366 = vld [vmem:[#allocation2 + $0x82] sm:$0xff]
        %v367 = vld [vmem:[#allocation2 + $0x92] sm:$0xff]
        %v368 = vld [vmem:[#allocation2 + $0x9a] sm:$0xff]
        %v369 = vld [vmem:[#allocation2 + $0xaa] sm:$0xff]
        %v370 = vld [vmem:[#allocation2 + $0xb2] sm:$0xff]
        %v371 = vpack.c.bf16 %v340, %v339
        %v372 = vpack.c.bf16 %v308, %v307
        %v373 = vpack.c.bf16 %v356, %v355
        %v374 = vpack.c.bf16 %v342, %v341
        %v375 = vpack.c.bf16 %v310, %v309
        %v376 = vpack.c.bf16 %v358, %v357
        %v377 = vpack.c.bf16 %v344, %v343
        %v378 = vpack.c.bf16 %v312, %v311
        %v379 = vpack.c.bf16 %v360, %v359
        %v380 = vpack.c.bf16 %v346, %v345
        %v381 = vpack.c.bf16 %v314, %v313
        %v382 = vpack.c.bf16 %v362, %v361
        %v383 = vpack.c.bf16 %v348, %v347
        %v384 = vpack.c.bf16 %v316, %v315
        %v385 = vpack.c.bf16 %v364, %v363
        %v386 = vpack.c.bf16 %v350, %v349
        %v387 = vpack.c.bf16 %v318, %v317
        %v388 = vpack.c.bf16 %v366, %v365
        %v389 = vpack.c.bf16 %v352, %v351
        %v390 = vpack.c.bf16 %v320, %v319
        %v391 = vpack.c.bf16 %v368, %v367
        %v392 = vpack.c.bf16 %v354, %v353
        %v393 = vpack.c.bf16 %v322, %v321
        %v394 = vpack.c.bf16 %v370, %v369
        %v395 = vld [vmem:[#allocation6] sm:$0xf]
        %v396 = vld [vmem:[#allocation6 + $0x4] sm:$0xf]
        %v397 = vld [vmem:[#allocation6 + $0x8] sm:$0xf]
        %v398 = vld [vmem:[#allocation6 + $0xc] sm:$0xf]
        %v399 = vld [vmem:[#allocation6 + $0x10] sm:$0xf]
        %v400 = vld [vmem:[#allocation6 + $0x14] sm:$0xf]
        %v401 = vld [vmem:[#allocation6 + $0x18] sm:$0xf]
        %v402 = vld [vmem:[#allocation6 + $0x1c] sm:$0xf]
        %v403 = vld [vmem:[#allocation6 + $0x20] sm:$0xf]
        %v404 = vld [vmem:[#allocation6 + $0x24] sm:$0xf]
        %v405 = vld [vmem:[#allocation6 + $0x28] sm:$0xf]
        %v406 = vld [vmem:[#allocation6 + $0x2c] sm:$0xf]
        %v407 = vld [vmem:[#allocation6 + $0x30] sm:$0xf]
        %v408 = vld [vmem:[#allocation6 + $0x34] sm:$0xf]
        %v409 = vld [vmem:[#allocation6 + $0x38] sm:$0xf]
        %v410 = vld [vmem:[#allocation6 + $0x3c] sm:$0xf]
        %v411 = vld [vmem:[#allocation6 + $0x40] sm:$0xf]
        %v412 = vld [vmem:[#allocation6 + $0x44] sm:$0xf]
        %v413 = vld [vmem:[#allocation6 + $0x48] sm:$0xf]
        %v414 = vld [vmem:[#allocation6 + $0x4c] sm:$0xf]
        %v415 = vld [vmem:[#allocation6 + $0x50] sm:$0xf]
        %v416 = vld [vmem:[#allocation6 + $0x54] sm:$0xf]
        %v417 = vld [vmem:[#allocation6 + $0x58] sm:$0xf]
        %v418 = vld [vmem:[#allocation6 + $0x5c] sm:$0xf]
        %v419 = vld [vmem:[#allocation6 + $0x60] sm:$0xf]
        %v420 = vld [vmem:[#allocation6 + $0x64] sm:$0xf]
        %v421 = vld [vmem:[#allocation6 + $0x68] sm:$0xf]
        %v422 = vld [vmem:[#allocation6 + $0x6c] sm:$0xf]
        %v423 = vld [vmem:[#allocation6 + $0x70] sm:$0xf]
        %v424 = vld [vmem:[#allocation6 + $0x74] sm:$0xf]
        %v425 = vld [vmem:[#allocation6 + $0x78] sm:$0xf]
        %v426 = vld [vmem:[#allocation6 + $0x7c] sm:$0xf]
        %v427 = vld [vmem:[#allocation6 + $0x80] sm:$0xf]
        %v428 = vld [vmem:[#allocation6 + $0x84] sm:$0xf]
        %v429 = vld [vmem:[#allocation6 + $0x88] sm:$0xf]
        %v430 = vld [vmem:[#allocation6 + $0x8c] sm:$0xf]
        %v431 = vld [vmem:[#allocation6 + $0x90] sm:$0xf]
        %v432 = vld [vmem:[#allocation6 + $0x94] sm:$0xf]
        %v433 = vld [vmem:[#allocation6 + $0x98] sm:$0xf]
        %v434 = vld [vmem:[#allocation6 + $0x9c] sm:$0xf]
        %v435 = vld [vmem:[#allocation6 + $0xa0] sm:$0xf]
        %v436 = vld [vmem:[#allocation6 + $0xa4] sm:$0xf]
        %v437 = vld [vmem:[#allocation6 + $0xa8] sm:$0xf]
        %v438 = vld [vmem:[#allocation6 + $0xac] sm:$0xf]
        %v439 = vld [vmem:[#allocation6 + $0xb0] sm:$0xf]
        %v440 = vld [vmem:[#allocation6 + $0xb4] sm:$0xf]
        %v441 = vld [vmem:[#allocation6 + $0xb8] sm:$0xf]
        %v442 = vld [vmem:[#allocation6 + $0xbc] sm:$0xf]
        %v443 = vld [vmem:[%s2] sm:$0x1]
        %v445 = vlaneseq
        %v446 = vshrl.u32 %v445, 7
        %v447 = vsub.s32 0, %v446
        %v448 = vrot.slane %v443, %v447
        %v498 = vunpack.c.l.b16 %v395
        %v499 = vunpack.c.l.b16 %v396
        %v500 = vunpack.c.l.b16 %v397
        %v501 = vunpack.c.l.b16 %v398
        %v502 = vunpack.c.l.b16 %v399
        %v503 = vunpack.c.l.b16 %v400
        %v504 = vunpack.c.l.b16 %v401
        %v505 = vunpack.c.l.b16 %v402
        %v506 = vunpack.c.l.b16 %v403
        %v507 = vunpack.c.l.b16 %v404
        %v508 = vunpack.c.l.b16 %v405
        %v509 = vunpack.c.l.b16 %v406
        %v510 = vunpack.c.l.b16 %v407
        %v511 = vunpack.c.l.b16 %v408
        %v512 = vunpack.c.l.b16 %v409
        %v513 = vunpack.c.l.b16 %v410
        %v514 = vunpack.c.l.b16 %v411
        %v515 = vunpack.c.l.b16 %v412
        %v516 = vunpack.c.l.b16 %v413
        %v517 = vunpack.c.l.b16 %v414
        %v518 = vunpack.c.l.b16 %v415
        %v519 = vunpack.c.l.b16 %v416
        %v520 = vunpack.c.l.b16 %v417
        %v521 = vunpack.c.l.b16 %v418
        %v522 = vunpack.c.l.b16 %v419
        %v523 = vunpack.c.l.b16 %v420
        %v524 = vunpack.c.l.b16 %v421
        %v525 = vunpack.c.l.b16 %v422
        %v526 = vunpack.c.l.b16 %v423
        %v527 = vunpack.c.l.b16 %v424
        %v528 = vunpack.c.l.b16 %v425
        %v529 = vunpack.c.l.b16 %v426
        %v530 = vunpack.c.l.b16 %v427
        %v531 = vunpack.c.l.b16 %v428
        %v532 = vunpack.c.l.b16 %v429
        %v533 = vunpack.c.l.b16 %v430
        %v534 = vunpack.c.l.b16 %v431
        %v535 = vunpack.c.l.b16 %v432
        %v536 = vunpack.c.l.b16 %v433
        %v537 = vunpack.c.l.b16 %v434
        %v538 = vunpack.c.l.b16 %v435
        %v539 = vunpack.c.l.b16 %v436
        %v540 = vunpack.c.l.b16 %v437
        %v541 = vunpack.c.l.b16 %v438
        %v542 = vunpack.c.l.b16 %v439
        %v543 = vunpack.c.l.b16 %v440
        %v544 = vunpack.c.l.b16 %v441
        %v545 = vunpack.c.l.b16 %v442
        %v546 = vpack.c.b16 %v499, %v498
        %v547 = vpack.c.b16 %v501, %v500
        %v548 = vpack.c.b16 %v503, %v502
        %v549 = vpack.c.b16 %v505, %v504
        %v550 = vpack.c.b16 %v507, %v506
        %v551 = vpack.c.b16 %v509, %v508
        %v552 = vpack.c.b16 %v511, %v510
        %v553 = vpack.c.b16 %v513, %v512
        %v554 = vpack.c.b16 %v515, %v514
        %v555 = vpack.c.b16 %v517, %v516
        %v556 = vpack.c.b16 %v519, %v518
        %v557 = vpack.c.b16 %v521, %v520
        %v558 = vpack.c.b16 %v523, %v522
        %v559 = vpack.c.b16 %v525, %v524
        %v560 = vpack.c.b16 %v527, %v526
        %v561 = vpack.c.b16 %v529, %v528
        %v562 = vpack.c.b16 %v531, %v530
        %v563 = vpack.c.b16 %v533, %v532
        %v564 = vpack.c.b16 %v535, %v534
        %v565 = vpack.c.b16 %v537, %v536
        %v566 = vpack.c.b16 %v539, %v538
        %v567 = vpack.c.b16 %v541, %v540
        %v568 = vpack.c.b16 %v543, %v542
        %v569 = vpack.c.b16 %v545, %v544
        %594 = vmatprep.subr.bf16.mxu0 0
        %595 = vmatpush1.bf16.msra.mxu0 %v546
        %596 = vmatprep.subr.bf16.mxu0 0
        %597 = vmatpush1.bf16.msra.mxu0 %v547
        %598 = vmatprep.subr.bf16.mxu0 0
        %599 = vmatpush1.bf16.msra.mxu0 %v548
        %600 = vmatprep.subr.bf16.mxu0 0
        %601 = vmatpush1.bf16.msra.mxu0 %v549
        %602 = vmatprep.subr.bf16.mxu0 0
        %603 = vmatpush1.bf16.msra.mxu0 %v550
        %604 = vmatprep.subr.bf16.mxu0 0
        %605 = vmatpush1.bf16.msra.mxu0 %v551
        %606 = vmatprep.subr.bf16.mxu0 0
        %607 = vmatpush1.bf16.msra.mxu0 %v552
        %608 = vmatprep.subr.bf16.mxu0 0
        %609 = vmatpush1.bf16.msra.mxu0 %v553
        %610 = vmatprep.subr.bf16.mxu0 0
        %611 = vmatpush1.bf16.msra.mxu0 %v554
        %612 = vmatprep.subr.bf16.mxu0 0
        %613 = vmatpush1.bf16.msra.mxu0 %v555
        %614 = vmatprep.subr.bf16.mxu0 0
        %615 = vmatpush1.bf16.msra.mxu0 %v556
        %616 = vmatprep.subr.bf16.mxu0 0
        %617 = vmatpush1.bf16.msra.mxu0 %v557
        %618 = vmatprep.subr.bf16.mxu0 0
        %619 = vmatpush1.bf16.msra.mxu0 %v558
        %620 = vmatprep.subr.bf16.mxu0 0
        %621 = vmatpush1.bf16.msra.mxu0 %v559
        %622 = vmatprep.subr.bf16.mxu0 0
        %623 = vmatpush1.bf16.msra.mxu0 %v560
        %624 = vmatprep.subr.bf16.mxu0 0
        %625 = vmatpush1.bf16.msra.mxu0 %v561
        %626 = vmatprep.mubr.bf16.mxu0 %v372
        %627 = vmatmul.mubr.bf16.gmra.mrb[0].mxu0 %v371
        %v628 = vpop.f32.mrb[0].mxu0
        %v629 = vadd.f32 %v448, %v628
        %v630 = vpop.f32.mrb[0].mxu0
        %v631 = vpop.f32.mrb[0].mxu0
        %v632 = vadd.f32 %v448, %v631
        %v633 = vpop.f32.mrb[0].mxu0
        %634 = vmatprep.mubr.bf16.mxu0 %v375
        %635 = vmatmul.mubr.bf16.gmra.mrb[0].mxu0 %v374
        %v636 = vpop.f32.mrb[0].mxu0
        %v637 = vadd.f32 %v448, %v636
        %v638 = vpop.f32.mrb[0].mxu0
        %v639 = vpop.f32.mrb[0].mxu0
        %v640 = vadd.f32 %v448, %v639
        %v641 = vpop.f32.mrb[0].mxu0
        %642 = vmatprep.mubr.bf16.mxu0 %v378
        %643 = vmatmul.mubr.bf16.gmra.mrb[0].mxu0 %v377
        %v644 = vpop.f32.mrb[0].mxu0
        %v645 = vadd.f32 %v448, %v644
        %v646 = vpop.f32.mrb[0].mxu0
        %v647 = vpop.f32.mrb[0].mxu0
        %v648 = vadd.f32 %v448, %v647
        %v649 = vpop.f32.mrb[0].mxu0
        %650 = vmatprep.mubr.bf16.mxu0 %v381
        %651 = vmatmul.mubr.bf16.gmra.mrb[0].mxu0 %v380
        %v652 = vpop.f32.mrb[0].mxu0
        %v653 = vadd.f32 %v448, %v652
        %v654 = vpop.f32.mrb[0].mxu0
        %v655 = vpop.f32.mrb[0].mxu0
        %v656 = vadd.f32 %v448, %v655
        %v657 = vpop.f32.mrb[0].mxu0
        %658 = vmatprep.mubr.bf16.mxu0 %v384
        %659 = vmatmul.mubr.bf16.gmra.mrb[0].mxu0 %v383
        %v660 = vpop.f32.mrb[0].mxu0
        %v661 = vadd.f32 %v448, %v660
        %v662 = vpop.f32.mrb[0].mxu0
        %v663 = vpop.f32.mrb[0].mxu0
        %v664 = vadd.f32 %v448, %v663
        %v665 = vpop.f32.mrb[0].mxu0
        %666 = vmatprep.mubr.bf16.mxu0 %v387
        %667 = vmatmul.mubr.bf16.gmra.mrb[0].mxu0 %v386
        %v668 = vpop.f32.mrb[0].mxu0
        %v669 = vadd.f32 %v448, %v668
        %v670 = vpop.f32.mrb[0].mxu0
        %v671 = vpop.f32.mrb[0].mxu0
        %v672 = vadd.f32 %v448, %v671
        %v673 = vpop.f32.mrb[0].mxu0
        %674 = vmatprep.mubr.bf16.mxu0 %v390
        %675 = vmatmul.mubr.bf16.gmra.mrb[0].mxu0 %v389
        %v676 = vpop.f32.mrb[0].mxu0
        %v677 = vadd.f32 %v448, %v676
        %v678 = vpop.f32.mrb[0].mxu0
        %v679 = vpop.f32.mrb[0].mxu0
        %v680 = vadd.f32 %v448, %v679
        %v681 = vpop.f32.mrb[0].mxu0
        %682 = vmatprep.mubr.bf16.mxu0 %v393
        %683 = vmatmul.mubr.bf16.gmra.mrb[0].mxu0 %v392
        %v684 = vpop.f32.mrb[0].mxu0
        %v685 = vadd.f32 %v448, %v684
        %v686 = vpop.f32.mrb[0].mxu0
        %v687 = vpop.f32.mrb[0].mxu0
        %v688 = vadd.f32 %v448, %v687
        %v689 = vpop.f32.mrb[0].mxu0
        %690 = vdwg.mxu0
        %691 = vmatprep.subr.bf16.mxu0 0
        %692 = vmatpush1.bf16.msra.mxu0 %v562
        %693 = vmatprep.subr.bf16.mxu0 0
        %694 = vmatpush1.bf16.msra.mxu0 %v563
        %695 = vmatprep.subr.bf16.mxu0 0
        %696 = vmatpush1.bf16.msra.mxu0 %v564
        %697 = vmatprep.subr.bf16.mxu0 0
        %698 = vmatpush1.bf16.msra.mxu0 %v565
        %699 = vmatprep.subr.bf16.mxu0 0
        %700 = vmatpush1.bf16.msra.mxu0 %v566
        %701 = vmatprep.subr.bf16.mxu0 0
        %702 = vmatpush1.bf16.msra.mxu0 %v567
        %703 = vmatprep.subr.bf16.mxu0 0
        %704 = vmatpush1.bf16.msra.mxu0 %v568
        %705 = vmatprep.subr.bf16.mxu0 0
        %706 = vmatpush1.bf16.msra.mxu0 %v569
        %707 = vmatprep.subr.bf16.mxu0 0
        %708 = vmatpush1.bf16.msra.mxu0 0
        %709 = vmatprep.subr.bf16.mxu0 0
        %710 = vmatpush1.bf16.msra.mxu0 0
        %711 = vmatprep.subr.bf16.mxu0 0
        %712 = vmatpush1.bf16.msra.mxu0 0
        %713 = vmatprep.subr.bf16.mxu0 0
        %714 = vmatpush1.bf16.msra.mxu0 0
        %715 = vmatprep.subr.bf16.mxu0 0
        %716 = vmatpush1.bf16.msra.mxu0 0
        %717 = vmatprep.subr.bf16.mxu0 0
        %718 = vmatpush1.bf16.msra.mxu0 0
        %719 = vmatprep.subr.bf16.mxu0 0
        %720 = vmatpush1.bf16.msra.mxu0 0
        %721 = vmatprep.subr.bf16.mxu0 0
        %722 = vmatpush1.bf16.msra.mxu0 0
        %723 = vmatprep.mubr.bf16.mxu0 0
        %724 = vmatmul.mubr.bf16.gmra.mrb[0].mxu0 %v373
        %v725 = vpop.f32.mrb[0].mxu0
        %v726 = vadd.f32 %v629, %v725
        %v727 = vpop.f32.mrb[0].mxu0
        %v728 = vpop.f32.mrb[0].mxu0
        %v729 = vadd.f32 %v632, %v728
        %v730 = vpop.f32.mrb[0].mxu0
        %731 = vmatprep.mubr.bf16.mxu0 0
        %732 = vmatmul.mubr.bf16.gmra.mrb[0].mxu0 %v376
        %v733 = vpop.f32.mrb[0].mxu0
        %v734 = vadd.f32 %v637, %v733
        %v735 = vpop.f32.mrb[0].mxu0
        %v736 = vpop.f32.mrb[0].mxu0
        %v737 = vadd.f32 %v640, %v736
        %v738 = vpop.f32.mrb[0].mxu0
        %739 = vmatprep.mubr.bf16.mxu0 0
        %740 = vmatmul.mubr.bf16.gmra.mrb[0].mxu0 %v379
        %v741 = vpop.f32.mrb[0].mxu0
        %v742 = vadd.f32 %v645, %v741
        %v743 = vpop.f32.mrb[0].mxu0
        %v744 = vpop.f32.mrb[0].mxu0
        %v745 = vadd.f32 %v648, %v744
        %v746 = vpop.f32.mrb[0].mxu0
        %747 = vmatprep.mubr.bf16.mxu0 0
        %748 = vmatmul.mubr.bf16.gmra.mrb[0].mxu0 %v382
        %v749 = vpop.f32.mrb[0].mxu0
        %v750 = vadd.f32 %v653, %v749
        %v751 = vpop.f32.mrb[0].mxu0
        %v752 = vpop.f32.mrb[0].mxu0
        %v753 = vadd.f32 %v656, %v752
        %v754 = vpop.f32.mrb[0].mxu0
        %755 = vmatprep.mubr.bf16.mxu0 0
        %756 = vmatmul.mubr.bf16.gmra.mrb[0].mxu0 %v385
        %v757 = vpop.f32.mrb[0].mxu0
        %v758 = vadd.f32 %v661, %v757
        %v759 = vpop.f32.mrb[0].mxu0
        %v760 = vpop.f32.mrb[0].mxu0
        %v761 = vadd.f32 %v664, %v760
        %v762 = vpop.f32.mrb[0].mxu0
        %763 = vmatprep.mubr.bf16.mxu0 0
        %764 = vmatmul.mubr.bf16.gmra.mrb[0].mxu0 %v388
        %v765 = vpop.f32.mrb[0].mxu0
        %v766 = vadd.f32 %v669, %v765
        %v767 = vpop.f32.mrb[0].mxu0
        %v768 = vpop.f32.mrb[0].mxu0
        %v769 = vadd.f32 %v672, %v768
        %v770 = vpop.f32.mrb[0].mxu0
        %771 = vmatprep.mubr.bf16.mxu0 0
        %772 = vmatmul.mubr.bf16.gmra.mrb[0].mxu0 %v391
        %v773 = vpop.f32.mrb[0].mxu0
        %v774 = vadd.f32 %v677, %v773
        %v775 = vpop.f32.mrb[0].mxu0
        %v776 = vpop.f32.mrb[0].mxu0
        %v777 = vadd.f32 %v680, %v776
        %v778 = vpop.f32.mrb[0].mxu0
        %779 = vmatprep.mubr.bf16.mxu0 0
        %780 = vmatmul.mubr.bf16.gmra.mrb[0].mxu0 %v394
        %v781 = vpop.f32.mrb[0].mxu0
        %v782 = vadd.f32 %v685, %v781
        %v783 = vpop.f32.mrb[0].mxu0
        %v784 = vpop.f32.mrb[0].mxu0
        %v785 = vadd.f32 %v688, %v784
        %v786 = vpop.f32.mrb[0].mxu0
        %787 = vdwg.mxu0
        %v788 = vmax.f32 %v726, 0.0
        %v789 = vmax.f32 %v729, 0.0
        %v790 = vmax.f32 %v734, 0.0
        %v791 = vmax.f32 %v737, 0.0
        %v792 = vmax.f32 %v742, 0.0
        %v793 = vmax.f32 %v745, 0.0
        %v794 = vmax.f32 %v750, 0.0
        %v795 = vmax.f32 %v753, 0.0
        %v796 = vmax.f32 %v758, 0.0
        %v797 = vmax.f32 %v761, 0.0
        %v798 = vmax.f32 %v766, 0.0
        %v799 = vmax.f32 %v769, 0.0
        %v800 = vmax.f32 %v774, 0.0
        %v801 = vmax.f32 %v777, 0.0
        %v802 = vmax.f32 %v782, 0.0
        %v803 = vmax.f32 %v785, 0.0
        %804 = vst [vmem:[#allocation2 + $0x1] sm:$0xff] %v788
        %805 = vst [vmem:[#allocation2 + $0x9] sm:$0xff] %v789
        %806 = vst [vmem:[#allocation2 + $0x19] sm:$0xff] %v790
        %807 = vst [vmem:[#allocation2 + $0x21] sm:$0xff] %v791
        %808 = vst [vmem:[#allocation2 + $0x31] sm:$0xff] %v792
        %809 = vst [vmem:[#allocation2 + $0x39] sm:$0xff] %v793
        %810 = vst [vmem:[#allocation2 + $0x49] sm:$0xff] %v794
        %811 = vst [vmem:[#allocation2 + $0x51] sm:$0xff] %v795
        %812 = vst [vmem:[#allocation2 + $0x61] sm:$0xff] %v796
        %813 = vst [vmem:[#allocation2 + $0x69] sm:$0xff] %v797
        %814 = vst [vmem:[#allocation2 + $0x79] sm:$0xff] %v798
        %815 = vst [vmem:[#allocation2 + $0x81] sm:$0xff] %v799
        %816 = vst [vmem:[#allocation2 + $0x91] sm:$0xff] %v800
        %817 = vst [vmem:[#allocation2 + $0x99] sm:$0xff] %v801
        %818 = vst [vmem:[#allocation2 + $0xa9] sm:$0xff] %v802
        %819 = vst [vmem:[#allocation2 + $0xb1] sm:$0xff] %v803
        %v820 = vld [vmem:[#allocation2] sm:$0xff]
        %v821 = vld [vmem:[#allocation2 + $0x8] sm:$0xff]
        %v822 = vld [vmem:[#allocation2 + $0x18] sm:$0xff]
        %v823 = vld [vmem:[#allocation2 + $0x20] sm:$0xff]
        %v824 = vld [vmem:[#allocation2 + $0x30] sm:$0xff]
        %v825 = vld [vmem:[#allocation2 + $0x38] sm:$0xff]
        %v826 = vld [vmem:[#allocation2 + $0x48] sm:$0xff]
        %v827 = vld [vmem:[#allocation2 + $0x50] sm:$0xff]
        %v828 = vld [vmem:[#allocation2 + $0x60] sm:$0xff]
        %v829 = vld [vmem:[#allocation2 + $0x68] sm:$0xff]
        %v830 = vld [vmem:[#allocation2 + $0x78] sm:$0xff]
        %v831 = vld [vmem:[#allocation2 + $0x80] sm:$0xff]
        %v832 = vld [vmem:[#allocation2 + $0x90] sm:$0xff]
        %v833 = vld [vmem:[#allocation2 + $0x98] sm:$0xff]
        %v834 = vld [vmem:[#allocation2 + $0xa8] sm:$0xff]
        %v835 = vld [vmem:[#allocation2 + $0xb0] sm:$0xff]
        %v836 = vld [vmem:[#allocation2 + $0x2] sm:$0xff]
        %v837 = vld [vmem:[#allocation2 + $0xa] sm:$0xff]
        %v838 = vld [vmem:[#allocation2 + $0x1a] sm:$0xff]
        %v839 = vld [vmem:[#allocation2 + $0x22] sm:$0xff]
        %v840 = vld [vmem:[#allocation2 + $0x32] sm:$0xff]
        %v841 = vld [vmem:[#allocation2 + $0x3a] sm:$0xff]
        %v842 = vld [vmem:[#allocation2 + $0x4a] sm:$0xff]
        %v843 = vld [vmem:[#allocation2 + $0x52] sm:$0xff]
        %v844 = vld [vmem:[#allocation2 + $0x62] sm:$0xff]
        %v845 = vld [vmem:[#allocation2 + $0x6a] sm:$0xff]
        %v846 = vld [vmem:[#allocation2 + $0x7a] sm:$0xff]
        %v847 = vld [vmem:[#allocation2 + $0x82] sm:$0xff]
        %v848 = vld [vmem:[#allocation2 + $0x92] sm:$0xff]
        %v849 = vld [vmem:[#allocation2 + $0x9a] sm:$0xff]
        %v850 = vld [vmem:[#allocation2 + $0xaa] sm:$0xff]
        %v851 = vld [vmem:[#allocation2 + $0xb2] sm:$0xff]
        %v852 = vpack.c.bf16 %v821, %v820
        %v853 = vpack.c.bf16 %v789, %v788
        %v854 = vpack.c.bf16 %v837, %v836
        %v855 = vpack.c.bf16 %v823, %v822
        %v856 = vpack.c.bf16 %v791, %v790
        %v857 = vpack.c.bf16 %v839, %v838
        %v858 = vpack.c.bf16 %v825, %v824
        %v859 = vpack.c.bf16 %v793, %v792
        %v860 = vpack.c.bf16 %v841, %v840
        %v861 = vpack.c.bf16 %v827, %v826
        %v862 = vpack.c.bf16 %v795, %v794
        %v863 = vpack.c.bf16 %v843, %v842
        %v864 = vpack.c.bf16 %v829, %v828
        %v865 = vpack.c.bf16 %v797, %v796
        %v866 = vpack.c.bf16 %v845, %v844
        %v867 = vpack.c.bf16 %v831, %v830
        %v868 = vpack.c.bf16 %v799, %v798
        %v869 = vpack.c.bf16 %v847, %v846
        %v870 = vpack.c.bf16 %v833, %v832
        %v871 = vpack.c.bf16 %v801, %v800
        %v872 = vpack.c.bf16 %v849, %v848
        %v873 = vpack.c.bf16 %v835, %v834
        %v874 = vpack.c.bf16 %v803, %v802
        %v875 = vpack.c.bf16 %v851, %v850
        %v876 = vld [vmem:[#allocation8] sm:$0xf]
        %v877 = vld [vmem:[#allocation8 + $0x4] sm:$0xf]
        %v878 = vld [vmem:[#allocation8 + $0x8] sm:$0xf]
        %v879 = vld [vmem:[#allocation8 + $0xc] sm:$0xf]
        %v880 = vld [vmem:[#allocation8 + $0x10] sm:$0xf]
        %v881 = vld [vmem:[#allocation8 + $0x14] sm:$0xf]
        %v882 = vld [vmem:[#allocation8 + $0x18] sm:$0xf]
        %v883 = vld [vmem:[#allocation8 + $0x1c] sm:$0xf]
        %v884 = vld [vmem:[#allocation8 + $0x20] sm:$0xf]
        %v885 = vld [vmem:[#allocation8 + $0x24] sm:$0xf]
        %v886 = vld [vmem:[#allocation8 + $0x28] sm:$0xf]
        %v887 = vld [vmem:[#allocation8 + $0x2c] sm:$0xf]
        %v888 = vld [vmem:[#allocation8 + $0x30] sm:$0xf]
        %v889 = vld [vmem:[#allocation8 + $0x34] sm:$0xf]
        %v890 = vld [vmem:[#allocation8 + $0x38] sm:$0xf]
        %v891 = vld [vmem:[#allocation8 + $0x3c] sm:$0xf]
        %v892 = vld [vmem:[#allocation8 + $0x40] sm:$0xf]
        %v893 = vld [vmem:[#allocation8 + $0x44] sm:$0xf]
        %v894 = vld [vmem:[#allocation8 + $0x48] sm:$0xf]
        %v895 = vld [vmem:[#allocation8 + $0x4c] sm:$0xf]
        %v896 = vld [vmem:[#allocation8 + $0x50] sm:$0xf]
        %v897 = vld [vmem:[#allocation8 + $0x54] sm:$0xf]
        %v898 = vld [vmem:[#allocation8 + $0x58] sm:$0xf]
        %v899 = vld [vmem:[#allocation8 + $0x5c] sm:$0xf]
        %v900 = vld [vmem:[#allocation8 + $0x60] sm:$0xf]
        %v901 = vld [vmem:[#allocation8 + $0x64] sm:$0xf]
        %v902 = vld [vmem:[#allocation8 + $0x68] sm:$0xf]
        %v903 = vld [vmem:[#allocation8 + $0x6c] sm:$0xf]
        %v904 = vld [vmem:[#allocation8 + $0x70] sm:$0xf]
        %v905 = vld [vmem:[#allocation8 + $0x74] sm:$0xf]
        %v906 = vld [vmem:[#allocation8 + $0x78] sm:$0xf]
        %v907 = vld [vmem:[#allocation8 + $0x7c] sm:$0xf]
        %v908 = vld [vmem:[#allocation8 + $0x80] sm:$0xf]
        %v909 = vld [vmem:[#allocation8 + $0x84] sm:$0xf]
        %v910 = vld [vmem:[#allocation8 + $0x88] sm:$0xf]
        %v911 = vld [vmem:[#allocation8 + $0x8c] sm:$0xf]
        %v912 = vld [vmem:[#allocation8 + $0x90] sm:$0xf]
        %v913 = vld [vmem:[#allocation8 + $0x94] sm:$0xf]
        %v914 = vld [vmem:[#allocation8 + $0x98] sm:$0xf]
        %v915 = vld [vmem:[#allocation8 + $0x9c] sm:$0xf]
        %v916 = vld [vmem:[#allocation8 + $0xa0] sm:$0xf]
        %v917 = vld [vmem:[#allocation8 + $0xa4] sm:$0xf]
        %v918 = vld [vmem:[#allocation8 + $0xa8] sm:$0xf]
        %v919 = vld [vmem:[#allocation8 + $0xac] sm:$0xf]
        %v920 = vld [vmem:[#allocation8 + $0xb0] sm:$0xf]
        %v921 = vld [vmem:[#allocation8 + $0xb4] sm:$0xf]
        %v922 = vld [vmem:[#allocation8 + $0xb8] sm:$0xf]
        %v923 = vld [vmem:[#allocation8 + $0xbc] sm:$0xf]
        %v924 = vld [vmem:[%s4] sm:$0x1]
        %v926 = vlaneseq
        %v927 = vshrl.u32 %v926, 7
        %v928 = vsub.s32 0, %v927
        %v929 = vrot.slane %v924, %v928
        %v979 = vunpack.c.l.b16 %v876
        %v980 = vunpack.c.l.b16 %v877
        %v981 = vunpack.c.l.b16 %v878
        %v982 = vunpack.c.l.b16 %v879
        %v983 = vunpack.c.l.b16 %v880
        %v984 = vunpack.c.l.b16 %v881
        %v985 = vunpack.c.l.b16 %v882
        %v986 = vunpack.c.l.b16 %v883
        %v987 = vunpack.c.l.b16 %v884
        %v988 = vunpack.c.l.b16 %v885
        %v989 = vunpack.c.l.b16 %v886
        %v990 = vunpack.c.l.b16 %v887
        %v991 = vunpack.c.l.b16 %v888
        %v992 = vunpack.c.l.b16 %v889
        %v993 = vunpack.c.l.b16 %v890
        %v994 = vunpack.c.l.b16 %v891
        %v995 = vunpack.c.l.b16 %v892
        %v996 = vunpack.c.l.b16 %v893
        %v997 = vunpack.c.l.b16 %v894
        %v998 = vunpack.c.l.b16 %v895
        %v999 = vunpack.c.l.b16 %v896
        %v1000 = vunpack.c.l.b16 %v897
        %v1001 = vunpack.c.l.b16 %v898
        %v1002 = vunpack.c.l.b16 %v899
        %v1003 = vunpack.c.l.b16 %v900
        %v1004 = vunpack.c.l.b16 %v901
        %v1005 = vunpack.c.l.b16 %v902
        %v1006 = vunpack.c.l.b16 %v903
        %v1007 = vunpack.c.l.b16 %v904
        %v1008 = vunpack.c.l.b16 %v905
        %v1009 = vunpack.c.l.b16 %v906
        %v1010 = vunpack.c.l.b16 %v907
        %v1011 = vunpack.c.l.b16 %v908
        %v1012 = vunpack.c.l.b16 %v909
        %v1013 = vunpack.c.l.b16 %v910
        %v1014 = vunpack.c.l.b16 %v911
        %v1015 = vunpack.c.l.b16 %v912
        %v1016 = vunpack.c.l.b16 %v913
        %v1017 = vunpack.c.l.b16 %v914
        %v1018 = vunpack.c.l.b16 %v915
        %v1019 = vunpack.c.l.b16 %v916
        %v1020 = vunpack.c.l.b16 %v917
        %v1021 = vunpack.c.l.b16 %v918
        %v1022 = vunpack.c.l.b16 %v919
        %v1023 = vunpack.c.l.b16 %v920
        %v1024 = vunpack.c.l.b16 %v921
        %v1025 = vunpack.c.l.b16 %v922
        %v1026 = vunpack.c.l.b16 %v923
        %v1027 = vpack.c.b16 %v980, %v979
        %v1028 = vpack.c.b16 %v982, %v981
        %v1029 = vpack.c.b16 %v984, %v983
        %v1030 = vpack.c.b16 %v986, %v985
        %v1031 = vpack.c.b16 %v988, %v987
        %v1032 = vpack.c.b16 %v990, %v989
        %v1033 = vpack.c.b16 %v992, %v991
        %v1034 = vpack.c.b16 %v994, %v993
        %v1035 = vpack.c.b16 %v996, %v995
        %v1036 = vpack.c.b16 %v998, %v997
        %v1037 = vpack.c.b16 %v1000, %v999
        %v1038 = vpack.c.b16 %v1002, %v1001
        %v1039 = vpack.c.b16 %v1004, %v1003
        %v1040 = vpack.c.b16 %v1006, %v1005
        %v1041 = vpack.c.b16 %v1008, %v1007
        %v1042 = vpack.c.b16 %v1010, %v1009
        %v1043 = vpack.c.b16 %v1012, %v1011
        %v1044 = vpack.c.b16 %v1014, %v1013
        %v1045 = vpack.c.b16 %v1016, %v1015
        %v1046 = vpack.c.b16 %v1018, %v1017
        %v1047 = vpack.c.b16 %v1020, %v1019
        %v1048 = vpack.c.b16 %v1022, %v1021
        %v1049 = vpack.c.b16 %v1024, %v1023
        %v1050 = vpack.c.b16 %v1026, %v1025
        %1075 = vmatprep.subr.bf16.mxu0 0
        %1076 = vmatpush1.bf16.msra.mxu0 %v1027
        %1077 = vmatprep.subr.bf16.mxu0 0
        %1078 = vmatpush1.bf16.msra.mxu0 %v1028
        %1079 = vmatprep.subr.bf16.mxu0 0
        %1080 = vmatpush1.bf16.msra.mxu0 %v1029
        %1081 = vmatprep.subr.bf16.mxu0 0
        %1082 = vmatpush1.bf16.msra.mxu0 %v1030
        %1083 = vmatprep.subr.bf16.mxu0 0
        %1084 = vmatpush1.bf16.msra.mxu0 %v1031
        %1085 = vmatprep.subr.bf16.mxu0 0
        %1086 = vmatpush1.bf16.msra.mxu0 %v1032
        %1087 = vmatprep.subr.bf16.mxu0 0
        %1088 = vmatpush1.bf16.msra.mxu0 %v1033
        %1089 = vmatprep.subr.bf16.mxu0 0
        %1090 = vmatpush1.bf16.msra.mxu0 %v1034
        %1091 = vmatprep.subr.bf16.mxu0 0
        %1092 = vmatpush1.bf16.msra.mxu0 %v1035
        %1093 = vmatprep.subr.bf16.mxu0 0
        %1094 = vmatpush1.bf16.msra.mxu0 %v1036
        %1095 = vmatprep.subr.bf16.mxu0 0
        %1096 = vmatpush1.bf16.msra.mxu0 %v1037
        %1097 = vmatprep.subr.bf16.mxu0 0
        %1098 = vmatpush1.bf16.msra.mxu0 %v1038
        %1099 = vmatprep.subr.bf16.mxu0 0
        %1100 = vmatpush1.bf16.msra.mxu0 %v1039
        %1101 = vmatprep.subr.bf16.mxu0 0
        %1102 = vmatpush1.bf16.msra.mxu0 %v1040
        %1103 = vmatprep.subr.bf16.mxu0 0
        %1104 = vmatpush1.bf16.msra.mxu0 %v1041
        %1105 = vmatprep.subr.bf16.mxu0 0
        %1106 = vmatpush1.bf16.msra.mxu0 %v1042
        %1107 = vmatprep.mubr.bf16.mxu0 %v853
        %1108 = vmatmul.mubr.bf16.gmra.mrb[0].mxu0 %v852
        %v1109 = vpop.f32.mrb[0].mxu0
        %v1110 = vadd.f32 %v929, %v1109
        %v1111 = vpop.f32.mrb[0].mxu0
        %v1112 = vpop.f32.mrb[0].mxu0
        %v1113 = vadd.f32 %v929, %v1112
        %v1114 = vpop.f32.mrb[0].mxu0
        %1115 = vmatprep.mubr.bf16.mxu0 %v856
        %1116 = vmatmul.mubr.bf16.gmra.mrb[0].mxu0 %v855
        %v1117 = vpop.f32.mrb[0].mxu0
        %v1118 = vadd.f32 %v929, %v1117
        %v1119 = vpop.f32.mrb[0].mxu0
        %v1120 = vpop.f32.mrb[0].mxu0
        %v1121 = vadd.f32 %v929, %v1120
        %v1122 = vpop.f32.mrb[0].mxu0
        %1123 = vmatprep.mubr.bf16.mxu0 %v859
        %1124 = vmatmul.mubr.bf16.gmra.mrb[0].mxu0 %v858
        %v1125 = vpop.f32.mrb[0].mxu0
        %v1126 = vadd.f32 %v929, %v1125
        %v1127 = vpop.f32.mrb[0].mxu0
        %v1128 = vpop.f32.mrb[0].mxu0
        %v1129 = vadd.f32 %v929, %v1128
        %v1130 = vpop.f32.mrb[0].mxu0
        %1131 = vmatprep.mubr.bf16.mxu0 %v862
        %1132 = vmatmul.mubr.bf16.gmra.mrb[0].mxu0 %v861
        %v1133 = vpop.f32.mrb[0].mxu0
        %v1134 = vadd.f32 %v929, %v1133
        %v1135 = vpop.f32.mrb[0].mxu0
        %v1136 = vpop.f32.mrb[0].mxu0
        %v1137 = vadd.f32 %v929, %v1136
        %v1138 = vpop.f32.mrb[0].mxu0
        %1139 = vmatprep.mubr.bf16.mxu0 %v865
        %1140 = vmatmul.mubr.bf16.gmra.mrb[0].mxu0 %v864
        %v1141 = vpop.f32.mrb[0].mxu0
        %v1142 = vadd.f32 %v929, %v1141
        %v1143 = vpop.f32.mrb[0].mxu0
        %v1144 = vpop.f32.mrb[0].mxu0
        %v1145 = vadd.f32 %v929, %v1144
        %v1146 = vpop.f32.mrb[0].mxu0
        %1147 = vmatprep.mubr.bf16.mxu0 %v868
        %1148 = vmatmul.mubr.bf16.gmra.mrb[0].mxu0 %v867
        %v1149 = vpop.f32.mrb[0].mxu0
        %v1150 = vadd.f32 %v929, %v1149
        %v1151 = vpop.f32.mrb[0].mxu0
        %v1152 = vpop.f32.mrb[0].mxu0
        %v1153 = vadd.f32 %v929, %v1152
        %v1154 = vpop.f32.mrb[0].mxu0
        %1155 = vmatprep.mubr.bf16.mxu0 %v871
        %1156 = vmatmul.mubr.bf16.gmra.mrb[0].mxu0 %v870
        %v1157 = vpop.f32.mrb[0].mxu0
        %v1158 = vadd.f32 %v929, %v1157
        %v1159 = vpop.f32.mrb[0].mxu0
        %v1160 = vpop.f32.mrb[0].mxu0
        %v1161 = vadd.f32 %v929, %v1160
        %v1162 = vpop.f32.mrb[0].mxu0
        %1163 = vmatprep.mubr.bf16.mxu0 %v874
        %1164 = vmatmul.mubr.bf16.gmra.mrb[0].mxu0 %v873
        %v1165 = vpop.f32.mrb[0].mxu0
        %v1166 = vadd.f32 %v929, %v1165
        %v1167 = vpop.f32.mrb[0].mxu0
        %v1168 = vpop.f32.mrb[0].mxu0
        %v1169 = vadd.f32 %v929, %v1168
        %v1170 = vpop.f32.mrb[0].mxu0
        %1171 = vdwg.mxu0
        %1172 = vmatprep.subr.bf16.mxu0 0
        %1173 = vmatpush1.bf16.msra.mxu0 %v1043
        %1174 = vmatprep.subr.bf16.mxu0 0
        %1175 = vmatpush1.bf16.msra.mxu0 %v1044
        %1176 = vmatprep.subr.bf16.mxu0 0
        %1177 = vmatpush1.bf16.msra.mxu0 %v1045
        %1178 = vmatprep.subr.bf16.mxu0 0
        %1179 = vmatpush1.bf16.msra.mxu0 %v1046
        %1180 = vmatprep.subr.bf16.mxu0 0
        %1181 = vmatpush1.bf16.msra.mxu0 %v1047
        %1182 = vmatprep.subr.bf16.mxu0 0
        %1183 = vmatpush1.bf16.msra.mxu0 %v1048
        %1184 = vmatprep.subr.bf16.mxu0 0
        %1185 = vmatpush1.bf16.msra.mxu0 %v1049
        %1186 = vmatprep.subr.bf16.mxu0 0
        %1187 = vmatpush1.bf16.msra.mxu0 %v1050
        %1188 = vmatprep.subr.bf16.mxu0 0
        %1189 = vmatpush1.bf16.msra.mxu0 0
        %1190 = vmatprep.subr.bf16.mxu0 0
        %1191 = vmatpush1.bf16.msra.mxu0 0
        %1192 = vmatprep.subr.bf16.mxu0 0
        %1193 = vmatpush1.bf16.msra.mxu0 0
        %1194 = vmatprep.subr.bf16.mxu0 0
        %1195 = vmatpush1.bf16.msra.mxu0 0
        %1196 = vmatprep.subr.bf16.mxu0 0
        %1197 = vmatpush1.bf16.msra.mxu0 0
        %1198 = vmatprep.subr.bf16.mxu0 0
        %1199 = vmatpush1.bf16.msra.mxu0 0
        %1200 = vmatprep.subr.bf16.mxu0 0
        %1201 = vmatpush1.bf16.msra.mxu0 0
        %1202 = vmatprep.subr.bf16.mxu0 0
        %1203 = vmatpush1.bf16.msra.mxu0 0
        %1204 = vmatprep.mubr.bf16.mxu0 0
        %1205 = vmatmul.mubr.bf16.gmra.mrb[0].mxu0 %v854
        %v1206 = vpop.f32.mrb[0].mxu0
        %v1207 = vadd.f32 %v1110, %v1206
        %v1208 = vpop.f32.mrb[0].mxu0
        %v1209 = vpop.f32.mrb[0].mxu0
        %v1210 = vadd.f32 %v1113, %v1209
        %v1211 = vpop.f32.mrb[0].mxu0
        %1212 = vmatprep.mubr.bf16.mxu0 0
        %1213 = vmatmul.mubr.bf16.gmra.mrb[0].mxu0 %v857
        %v1214 = vpop.f32.mrb[0].mxu0
        %v1215 = vadd.f32 %v1118, %v1214
        %v1216 = vpop.f32.mrb[0].mxu0
        %v1217 = vpop.f32.mrb[0].mxu0
        %v1218 = vadd.f32 %v1121, %v1217
        %v1219 = vpop.f32.mrb[0].mxu0
        %1220 = vmatprep.mubr.bf16.mxu0 0
        %1221 = vmatmul.mubr.bf16.gmra.mrb[0].mxu0 %v860
        %v1222 = vpop.f32.mrb[0].mxu0
        %v1223 = vadd.f32 %v1126, %v1222
        %v1224 = vpop.f32.mrb[0].mxu0
        %v1225 = vpop.f32.mrb[0].mxu0
        %v1226 = vadd.f32 %v1129, %v1225
        %v1227 = vpop.f32.mrb[0].mxu0
        %1228 = vmatprep.mubr.bf16.mxu0 0
        %1229 = vmatmul.mubr.bf16.gmra.mrb[0].mxu0 %v863
        %v1230 = vpop.f32.mrb[0].mxu0
        %v1231 = vadd.f32 %v1134, %v1230
        %v1232 = vpop.f32.mrb[0].mxu0
        %v1233 = vpop.f32.mrb[0].mxu0
        %v1234 = vadd.f32 %v1137, %v1233
        %v1235 = vpop.f32.mrb[0].mxu0
        %1236 = vmatprep.mubr.bf16.mxu0 0
        %1237 = vmatmul.mubr.bf16.gmra.mrb[0].mxu0 %v866
        %v1238 = vpop.f32.mrb[0].mxu0
        %v1239 = vadd.f32 %v1142, %v1238
        %v1240 = vpop.f32.mrb[0].mxu0
        %v1241 = vpop.f32.mrb[0].mxu0
        %v1242 = vadd.f32 %v1145, %v1241
        %v1243 = vpop.f32.mrb[0].mxu0
        %1244 = vmatprep.mubr.bf16.mxu0 0
        %1245 = vmatmul.mubr.bf16.gmra.mrb[0].mxu0 %v869
        %v1246 = vpop.f32.mrb[0].mxu0
        %v1247 = vadd.f32 %v1150, %v1246
        %v1248 = vpop.f32.mrb[0].mxu0
        %v1249 = vpop.f32.mrb[0].mxu0
        %v1250 = vadd.f32 %v1153, %v1249
        %v1251 = vpop.f32.mrb[0].mxu0
        %1252 = vmatprep.mubr.bf16.mxu0 0
        %1253 = vmatmul.mubr.bf16.gmra.mrb[0].mxu0 %v872
        %v1254 = vpop.f32.mrb[0].mxu0
        %v1255 = vadd.f32 %v1158, %v1254
        %v1256 = vpop.f32.mrb[0].mxu0
        %v1257 = vpop.f32.mrb[0].mxu0
        %v1258 = vadd.f32 %v1161, %v1257
        %v1259 = vpop.f32.mrb[0].mxu0
        %1260 = vmatprep.mubr.bf16.mxu0 0
        %1261 = vmatmul.mubr.bf16.gmra.mrb[0].mxu0 %v875
        %v1262 = vpop.f32.mrb[0].mxu0
        %v1263 = vadd.f32 %v1166, %v1262
        %v1264 = vpop.f32.mrb[0].mxu0
        %v1265 = vpop.f32.mrb[0].mxu0
        %v1266 = vadd.f32 %v1169, %v1265
        %v1267 = vpop.f32.mrb[0].mxu0
        %1268 = vdwg.mxu0
        %v1269 = vadd.f32 %v1207, %v307
        %v1270 = vadd.f32 %v1210, %v308
        %v1271 = vadd.f32 %v1215, %v309
        %v1272 = vadd.f32 %v1218, %v310
        %v1273 = vadd.f32 %v1223, %v311
        %v1274 = vadd.f32 %v1226, %v312
        %v1275 = vadd.f32 %v1231, %v313
        %v1276 = vadd.f32 %v1234, %v314
        %v1277 = vadd.f32 %v1239, %v315
        %v1278 = vadd.f32 %v1242, %v316
        %v1279 = vadd.f32 %v1247, %v317
        %v1280 = vadd.f32 %v1250, %v318
        %v1281 = vadd.f32 %v1255, %v319
        %v1282 = vadd.f32 %v1258, %v320
        %v1283 = vadd.f32 %v1263, %v321
        %v1284 = vadd.f32 %v1266, %v322
        %v1285 = vmax.f32 %v1269, 0.0
        %v1286 = vmax.f32 %v1270, 0.0
        %v1287 = vmax.f32 %v1271, 0.0
        %v1288 = vmax.f32 %v1272, 0.0
        %v1289 = vmax.f32 %v1273, 0.0
        %v1290 = vmax.f32 %v1274, 0.0
        %v1291 = vmax.f32 %v1275, 0.0
        %v1292 = vmax.f32 %v1276, 0.0
        %v1293 = vmax.f32 %v1277, 0.0
        %v1294 = vmax.f32 %v1278, 0.0
        %v1295 = vmax.f32 %v1279, 0.0
        %v1296 = vmax.f32 %v1280, 0.0
        %v1297 = vmax.f32 %v1281, 0.0
        %v1298 = vmax.f32 %v1282, 0.0
        %v1299 = vmax.f32 %v1283, 0.0
        %v1300 = vmax.f32 %v1284, 0.0
        %1301 = vst [vmem:[%s271] sm:$0xff] %v1285
        %1302 = vst [vmem:[%s271 + $0x8] sm:$0xff] %v1286
        %1303 = vst [vmem:[%s271 + $0x10] sm:$0xff] %v1287
        %1304 = vst [vmem:[%s271 + $0x18] sm:$0xff] %v1288
        %1305 = vst [vmem:[%s271 + $0x20] sm:$0xff] %v1289
        %1306 = vst [vmem:[%s271 + $0x28] sm:$0xff] %v1290
        %1307 = vst [vmem:[%s271 + $0x30] sm:$0xff] %v1291
        %1308 = vst [vmem:[%s271 + $0x38] sm:$0xff] %v1292
        %1309 = vst [vmem:[%s271 + $0x40] sm:$0xff] %v1293
        %1310 = vst [vmem:[%s271 + $0x48] sm:$0xff] %v1294
        %1311 = vst [vmem:[%s271 + $0x50] sm:$0xff] %v1295
        %1312 = vst [vmem:[%s271 + $0x58] sm:$0xff] %v1296
        %1313 = vst [vmem:[%s271 + $0x60] sm:$0xff] %v1297
        %1314 = vst [vmem:[%s271 + $0x68] sm:$0xff] %v1298
        %1315 = vst [vmem:[%s271 + $0x70] sm:$0xff] %v1299
        %1316 = vst [vmem:[%s271 + $0x78] sm:$0xff] %v1300
        %s1317 = sand.u32 %s141, 1
        %s1318 = scalar_lea.sflag [#allocation5], %s1317
        %s1319 = sand.u32 %s141, 1
        %s1320 = smul.addr %s1319, 128
        %s1321 = scalar_lea.vmem [#allocation9], %s1320
        // Predicated region
        $region53: #{tpu_custom_call.1} parent=39 // pred_check
          %p1322 = pneg %p151
        $region54: #{tpu_custom_call.1} parent=39 // pred_check_branch
          %1324 = sbr.rel (%p1322) target = $region56
        $region55: #{tpu_custom_call.1} parent=39 // pred_region
          %s1325 = smul.u32 16, %s23
          %s1327 = ssub.s32 2048, 2048
          %1328 = vsyncadd %s1318, %s1327
          %s1329 = smul.addr %s1325, 128
          %s1330 = scalar_lea.hbm %s5, %s1329
          %s1331 = sshll.u32 %s1321, 4
          %s1332 = int_to_ptr.vmem [resolvable:$true] %s1331
          %1337 = dma.vmem_to_hbm [thread:$0]  %s1332, 2048, %s1330, %s1318, 128, 128, 8
        $region56: #{tpu_custom_call.1} parent=39 // pred_fallthru
          _
      $region40: #{tpu_custom_call.1} parent=5 // pred_fallthru
        _
      %p1338 = scmp.le.s32.totalorder 2, %s18
      // Predicated region
      $region57: #{tpu_custom_call.1} parent=5 // pred_check
        %p1339 = pneg %p1338
      $region58: #{tpu_custom_call.1} parent=5 // pred_check_branch
        %1341 = sbr.rel (%p1339) target = $region60
      $region59: #{tpu_custom_call.1} parent=5 // pred_region
        %s1342 = ssub.s32 %s18, 2
        // Predicated region
        $region61: #{tpu_custom_call.1} parent=59 // pred_check
          %p1343 = pneg %p157
        $region62: #{tpu_custom_call.1} parent=59 // pred_check_branch
          %1345 = sbr.rel (%p1343) target = $region64
        $region63: #{tpu_custom_call.1} parent=59 // pred_region
          %s1346 = sand.u32 %s142, 1
          %s1347 = scalar_lea.sflag [#allocation5], %s1346
          %s1348 = sand.u32 %s142, 1
          %s1349 = smul.addr %s1348, 128
          %s1350 = scalar_lea.vmem [#allocation9], %s1349
          %1351 = dma.done %s1347, 2048
        $region64: #{tpu_custom_call.1} parent=59 // pred_fallthru
          _
      $region60: #{tpu_custom_call.1} parent=5 // pred_fallthru
        _
    $region6: #{tpu_custom_call.1} parent=1 // loop_footer
      %s22 = sadd.s32 1, %s18
    $region7: #{tpu_custom_call.1} parent=1 // loop_footer_branch
      %17 = sbr.rel target = $region3
    $region8: #{tpu_custom_call.1} parent=1 // loop_exit
      _
    %1352 = vsyncpa [#allocation4], 1
    %s1353 = scalar_lea.sflag [#allocation4], 1
    %1354 = vsyncpa %s1353, 1
    %1355 = vsyncpa [#allocation7], 1
    %1356 = vsyncpa [#allocation5], 1
    %s1357 = scalar_lea.sflag [#allocation5], 1
    %1358 = vsyncpa %s1357, 1

</llo_original>
